<compile_context>
chip_gen: v5e
topology: v5e:2x2
jax: 0.10.0
libtpu: 0.0.40
codegen_flags: <defaults>
</compile_context>

<pallas_src>
import jax
import jax.numpy as jnp
from jax import lax
from jax.experimental import pallas as pl
from jax.experimental.pallas import tpu as pltpu

# MLP dims: 10 -> 256 -> 512 -> 1024 -> 784 (padded to 896 lanes)
D_IN, D1, D2, D3 = 10, 256, 512, 1024
D_OUT, D_OUT_PAD = 784, 896           # 896 = 7 * 128
TILE_K = 256                          # layer-3 output / layer-4 contraction tile
N_TILES = D3 // TILE_K                # 4 grid steps


def _leaky_relu(x, slope=0.2):
    # max(x, slope*x) == LeakyReLU(slope) for 0 < slope < 1
    return jnp.maximum(x, slope * x)


def generator_mlp_kernel(labels_ref, emb_ref,
                         w1_ref, b1_ref,
                         w2_ref, b2_ref,
                         w3_ref, b3_ref,
                         w4_ref, b4_ref,
                         out_ref,
                         h2_ref, acc_ref):
    j = pl.program_id(0)
    B = labels_ref.shape[0]

    @pl.when(j == 0)
    def _():
        # Fused embedding lookup: exact one-hot matmul (f32, exact row select).
        iota = lax.broadcasted_iota(jnp.int32, (B, D_IN), 1)
        onehot = (iota == labels_ref[...]).astype(jnp.float32)
        c = jnp.dot(onehot, emb_ref[...], preferred_element_type=jnp.float32)

        # Layer 1: (B,10) @ (10,256) + b1, LeakyReLU(0.2)
        h1 = _leaky_relu(
            jnp.dot(c.astype(jnp.bfloat16), w1_ref[...],
                    preferred_element_type=jnp.float32) + b1_ref[...])
        # Layer 2: (B,256) @ (256,512) + b2, LeakyReLU(0.2) -> persistent bf16 scratch
        h2_ref[...] = _leaky_relu(
            jnp.dot(h1.astype(jnp.bfloat16), w2_ref[...],
                    preferred_element_type=jnp.float32) + b2_ref[...]
        ).astype(jnp.bfloat16)
        # Seed the layer-4 accumulator with the (zero-padded) bias.
        acc_ref[...] = jnp.broadcast_to(b4_ref[...], acc_ref.shape)

    # Layer 3 column tile j: (B,512) @ (512,256) + b3[:,tile], LeakyReLU(0.2)
    h3_j = _leaky_relu(
        jnp.dot(h2_ref[...], w3_ref[...],
                preferred_element_type=jnp.float32) + b3_ref[...])
    # Layer 4 partial contraction: (B,256) @ (256,896), f32 accumulate.
    acc_ref[...] += jnp.dot(h3_j.astype(jnp.bfloat16), w4_ref[...],
                            preferred_element_type=jnp.float32)

    @pl.when(j == pl.num_programs(0) - 1)
    def _():
        out_ref[...] = jnp.tanh(acc_ref[...])


def init_params(key):
    """Parameters mirroring the module's init_weights('normal', gain=0.02):
    Linear weights ~ N(0, 0.02), biases = 0; nn.Embedding(10,10) ~ N(0, 1).
    Weights are stored as (in, out) = transpose of torch's (out, in), in bf16.
    w4/b4 are lane-padded 784 -> 896 with zeros (sliced off in the wrapper)."""
    gain = 0.02
    ks = jax.random.split(key, 5)
    w4_f32 = gain * jax.random.normal(ks[4], (D3, D_OUT), jnp.float32)
    w4_pad = jnp.zeros((D3, D_OUT_PAD), jnp.float32).at[:, :D_OUT].set(w4_f32)
    return {
        "emb": jax.random.normal(ks[0], (10, D_IN), jnp.float32),
        "w1": (gain * jax.random.normal(ks[1], (D_IN, D1), jnp.float32)).astype(jnp.bfloat16),
        "b1": jnp.zeros((1, D1), jnp.float32),
        "w2": (gain * jax.random.normal(ks[2], (D1, D2), jnp.float32)).astype(jnp.bfloat16),
        "b2": jnp.zeros((1, D2), jnp.float32),
        "w3": (gain * jax.random.normal(ks[3], (D2, D3), jnp.float32)).astype(jnp.bfloat16),
        "b3": jnp.zeros((1, D3), jnp.float32),
        "w4": w4_pad.astype(jnp.bfloat16),
        "b4": jnp.zeros((1, D_OUT_PAD), jnp.float32),
    }


def generator_forward(labels, params):
    labels = labels.astype(jnp.int32).reshape(-1, 1)   # (B,1) for in-kernel one-hot
    B = labels.shape[0]

    def full(arr):
        return pl.BlockSpec(arr.shape, lambda j: (0,) * arr.ndim)

    operands = (labels, params["emb"],
                params["w1"], params["b1"],
                params["w2"], params["b2"],
                params["w3"], params["b3"],
                params["w4"], params["b4"])

    in_specs = [
        full(labels),                                        # labels (B,1) int32
        full(params["emb"]),                                 # (10,10) f32
        full(params["w1"]), full(params["b1"]),              # resident
        full(params["w2"]), full(params["b2"]),              # resident
        pl.BlockSpec((D2, TILE_K), lambda j: (0, j)),        # w3 column tile (pipelined)
        pl.BlockSpec((1, TILE_K), lambda j: (0, j)),         # b3 tile
        pl.BlockSpec((TILE_K, D_OUT_PAD), lambda j: (j, 0)), # w4 row tile (pipelined)
        full(params["b4"]),
    ]

    out = pl.pallas_call(
        generator_mlp_kernel,
        out_shape=jax.ShapeDtypeStruct((B, D_OUT_PAD), jnp.float32),
        grid=(N_TILES,),
        in_specs=in_specs,
        out_specs=pl.BlockSpec((B, D_OUT_PAD), lambda j: (0, 0)),
        scratch_shapes=[pltpu.VMEM((B, D2), jnp.bfloat16),         # h2 (persists, pre-cast)
                        pltpu.VMEM((B, D_OUT_PAD), jnp.float32)],  # layer-4 accumulator
        compiler_params=pltpu.CompilerParams(
            dimension_semantics=("arbitrary",),
            vmem_limit_bytes=16 << 20),
    )(*operands)

    return out[:, :D_OUT].reshape(B, 28, 28)


def generator_ref(labels, params):
    """Pure-JAX reference (weights de-quantized to f32)."""
    labels = labels.astype(jnp.int32)
    c = jnp.take(params["emb"], labels, axis=0)
    h = _leaky_relu(c @ params["w1"].astype(jnp.float32) + params["b1"])
    h = _leaky_relu(h @ params["w2"].astype(jnp.float32) + params["b2"])
    h = _leaky_relu(h @ params["w3"].astype(jnp.float32) + params["b3"])
    h = jnp.tanh(h @ params["w4"].astype(jnp.float32) + params["b4"])
    return h[:, :D_OUT].reshape(labels.shape[0], 28, 28)


if __name__ == "__main__":
    key = jax.random.PRNGKey(0)
    pkey, lkey = jax.random.split(key)

    params = init_params(pkey)

    B = 8
    labels = jax.random.randint(lkey, (B,), 0, 10, dtype=jnp.int32)

    out = generator_forward(labels, params)
    jax.block_until_ready(out)

    assert out.shape == (B, 28, 28), out.shape
    assert out.dtype == jnp.float32, out.dtype
    assert bool(jnp.all(jnp.abs(out) <= 1.0))

    ref = generator_ref(labels, params)
    assert bool(jnp.max(jnp.abs(out - ref)) < 1e-2), float(jnp.max(jnp.abs(out - ref)))

    print("KERNEL_OK")
</pallas_src>

<mosaic_0001>
module attributes {stable_mosaic.version = 11 : i64} {
  func.func @generator_mlp_kernel(%arg0: i32, %arg1: memref<8x1xi32, #tpu.memory_space<vmem>>, %arg2: memref<10x10xf32, #tpu.memory_space<vmem>>, %arg3: memref<10x256xbf16, #tpu.memory_space<vmem>>, %arg4: memref<1x256xf32, #tpu.memory_space<vmem>>, %arg5: memref<256x512xbf16, #tpu.memory_space<vmem>>, %arg6: memref<1x512xf32, #tpu.memory_space<vmem>>, %arg7: memref<512x256xbf16, #tpu.memory_space<vmem>>, %arg8: memref<1x256xf32, #tpu.memory_space<vmem>>, %arg9: memref<256x896xbf16, #tpu.memory_space<vmem>>, %arg10: memref<1x896xf32, #tpu.memory_space<vmem>>, %arg11: memref<8x896xf32, #tpu.memory_space<vmem>>, %arg12: memref<8x512xbf16, #tpu.memory_space<vmem>>, %arg13: memref<8x896xf32, #tpu.memory_space<vmem>>) attributes {dimension_semantics = [#tpu.dimension_semantics<arbitrary>], iteration_bounds = array<i64: 4>, scalar_prefetch = 0 : i64, scratch_operands = 2 : i64, tpu.core_type = #tpu.core_type<tc>, window_params = [{pipeline_mode = #tpu.pipeline_mode<synchronous>, transform_indices = @transform_0, window_bounds = array<i64: 8, 1>}, {pipeline_mode = #tpu.pipeline_mode<synchronous>, transform_indices = @transform_1, window_bounds = array<i64: 10, 10>}, {pipeline_mode = #tpu.pipeline_mode<synchronous>, transform_indices = @transform_2, window_bounds = array<i64: 10, 256>}, {pipeline_mode = #tpu.pipeline_mode<synchronous>, transform_indices = @transform_3, window_bounds = array<i64: 1, 256>}, {pipeline_mode = #tpu.pipeline_mode<synchronous>, transform_indices = @transform_4, window_bounds = array<i64: 256, 512>}, {pipeline_mode = #tpu.pipeline_mode<synchronous>, transform_indices = @transform_5, window_bounds = array<i64: 1, 512>}, {transform_indices = @transform_6, window_bounds = array<i64: 512, 256>}, {transform_indices = @transform_7, window_bounds = array<i64: 1, 256>}, {transform_indices = @transform_8, window_bounds = array<i64: 256, 896>}, {pipeline_mode = #tpu.pipeline_mode<synchronous>, transform_indices = @transform_9, window_bounds = array<i64: 1, 896>}, {pipeline_mode = #tpu.pipeline_mode<synchronous>, transform_indices = @transform_10, window_bounds = array<i64: 8, 896>}]} {
    %c0_i32 = arith.constant 0 : i32
    %0 = arith.cmpi eq, %arg0, %c0_i32 : i32
    %1 = arith.extui %0 : i1 to i32
    %c0_i32_0 = arith.constant 0 : i32
    %2 = arith.cmpi ne, %1, %c0_i32_0 : i32
    scf.if %2 {
      %21 = tpu.iota {dimensions = array<i32: 1>} : vector<8x10xi32>
      %c0_15 = arith.constant 0 : index
      %c0_16 = arith.constant 0 : index
      %22 = vector.load %arg1[%c0_15, %c0_16] : memref<8x1xi32, #tpu.memory_space<vmem>>, vector<8x1xi32>
      %23 = vector.broadcast %22 : vector<8x1xi32> to vector<8x10xi32>
      %24 = arith.cmpi eq, %21, %23 : vector<8x10xi32>
      %25 = arith.extui %24 : vector<8x10xi1> to vector<8x10xi32>
      %26 = arith.sitofp %25 : vector<8x10xi32> to vector<8x10xf32>
      %c0_17 = arith.constant 0 : index
      %c0_18 = arith.constant 0 : index
      %27 = vector.load %arg2[%c0_17, %c0_18] : memref<10x10xf32, #tpu.memory_space<vmem>>, vector<10x10xf32>
      %cst_19 = arith.constant dense<0.000000e+00> : vector<8x10xf32>
      %28 = tpu.matmul %26, %27, %cst_19 {dimension_numbers = #tpu.dot_dimension_numbers<[1], [0], [0], [1], [0, 0, 1, 1], [], []>} : vector<8x10xf32>, vector<10x10xf32>, vector<8x10xf32> -> vector<8x10xf32>
      %29 = arith.truncf %28 : vector<8x10xf32> to vector<8x10xbf16>
      %c0_20 = arith.constant 0 : index
      %c0_21 = arith.constant 0 : index
      %30 = vector.load %arg3[%c0_20, %c0_21] : memref<10x256xbf16, #tpu.memory_space<vmem>>, vector<10x256xbf16>
      %cst_22 = arith.constant dense<0.000000e+00> : vector<8x256xf32>
      %31 = tpu.matmul %29, %30, %cst_22 {dimension_numbers = #tpu.dot_dimension_numbers<[1], [0], [0], [1], [0, 0, 1, 1], [], []>} : vector<8x10xbf16>, vector<10x256xbf16>, vector<8x256xf32> -> vector<8x256xf32>
      %c0_23 = arith.constant 0 : index
      %c0_24 = arith.constant 0 : index
      %32 = vector.load %arg4[%c0_23, %c0_24] : memref<1x256xf32, #tpu.memory_space<vmem>>, vector<1x256xf32>
      %33 = vector.broadcast %32 : vector<1x256xf32> to vector<8x256xf32>
      %34 = arith.addf %31, %33 : vector<8x256xf32>
      %cst_25 = arith.constant 2.000000e-01 : f32
      %35 = vector.broadcast %cst_25 : f32 to vector<8x256xf32>
      %36 = arith.mulf %35, %34 : vector<8x256xf32>
      %37 = arith.maximumf %34, %36 : vector<8x256xf32>
      %38 = arith.truncf %37 : vector<8x256xf32> to vector<8x256xbf16>
      %c0_26 = arith.constant 0 : index
      %c0_27 = arith.constant 0 : index
      %39 = vector.load %arg5[%c0_26, %c0_27] : memref<256x512xbf16, #tpu.memory_space<vmem>>, vector<256x512xbf16>
      %cst_28 = arith.constant dense<0.000000e+00> : vector<8x512xf32>
      %40 = tpu.matmul %38, %39, %cst_28 {dimension_numbers = #tpu.dot_dimension_numbers<[1], [0], [0], [1], [0, 0, 1, 1], [], []>} : vector<8x256xbf16>, vector<256x512xbf16>, vector<8x512xf32> -> vector<8x512xf32>
      %c0_29 = arith.constant 0 : index
      %c0_30 = arith.constant 0 : index
      %41 = vector.load %arg6[%c0_29, %c0_30] : memref<1x512xf32, #tpu.memory_space<vmem>>, vector<1x512xf32>
      %42 = vector.broadcast %41 : vector<1x512xf32> to vector<8x512xf32>
      %43 = arith.addf %40, %42 : vector<8x512xf32>
      %cst_31 = arith.constant 2.000000e-01 : f32
      %44 = vector.broadcast %cst_31 : f32 to vector<8x512xf32>
      %45 = arith.mulf %44, %43 : vector<8x512xf32>
      %46 = arith.maximumf %43, %45 : vector<8x512xf32>
      %47 = arith.truncf %46 : vector<8x512xf32> to vector<8x512xbf16>
      %c0_32 = arith.constant 0 : index
      %c0_33 = arith.constant 0 : index
      %48 = vector.load %arg12[%c0_32, %c0_33] : memref<8x512xbf16, #tpu.memory_space<vmem>>, vector<8x512xbf16>
      tpu.vector_store %arg12[%c0_32, %c0_33], %47 {strides = array<i32>} : memref<8x512xbf16, #tpu.memory_space<vmem>>, vector<8x512xbf16>,
      %c0_34 = arith.constant 0 : index
      %c0_35 = arith.constant 0 : index
      %49 = vector.load %arg10[%c0_34, %c0_35] : memref<1x896xf32, #tpu.memory_space<vmem>>, vector<1x896xf32>
      %50 = vector.shape_cast %49 : vector<1x896xf32> to vector<1x896xf32>
      %51 = vector.broadcast %50 : vector<1x896xf32> to vector<8x896xf32>
      %c0_36 = arith.constant 0 : index
      %c0_37 = arith.constant 0 : index
      %52 = vector.load %arg13[%c0_36, %c0_37] : memref<8x896xf32, #tpu.memory_space<vmem>>, vector<8x896xf32>
      tpu.vector_store %arg13[%c0_36, %c0_37], %51 {strides = array<i32>} : memref<8x896xf32, #tpu.memory_space<vmem>>, vector<8x896xf32>,
    } else {
    }
    %c0 = arith.constant 0 : index
    %c0_1 = arith.constant 0 : index
    %3 = vector.load %arg12[%c0, %c0_1] : memref<8x512xbf16, #tpu.memory_space<vmem>>, vector<8x512xbf16>
    %c0_2 = arith.constant 0 : index
    %c0_3 = arith.constant 0 : index
    %4 = vector.load %arg7[%c0_2, %c0_3] : memref<512x256xbf16, #tpu.memory_space<vmem>>, vector<512x256xbf16>
    %cst = arith.constant dense<0.000000e+00> : vector<8x256xf32>
    %5 = tpu.matmul %3, %4, %cst {dimension_numbers = #tpu.dot_dimension_numbers<[1], [0], [0], [1], [0, 0, 1, 1], [], []>} : vector<8x512xbf16>, vector<512x256xbf16>, vector<8x256xf32> -> vector<8x256xf32>
    %c0_4 = arith.constant 0 : index
    %c0_5 = arith.constant 0 : index
    %6 = vector.load %arg8[%c0_4, %c0_5] : memref<1x256xf32, #tpu.memory_space<vmem>>, vector<1x256xf32>
    %7 = vector.broadcast %6 : vector<1x256xf32> to vector<8x256xf32>
    %8 = arith.addf %5, %7 : vector<8x256xf32>
    %cst_6 = arith.constant 2.000000e-01 : f32
    %9 = vector.broadcast %cst_6 : f32 to vector<8x256xf32>
    %10 = arith.mulf %9, %8 : vector<8x256xf32>
    %11 = arith.maximumf %8, %10 : vector<8x256xf32>
    %c0_7 = arith.constant 0 : index
    %c0_8 = arith.constant 0 : index
    %12 = vector.load %arg13[%c0_7, %c0_8] : memref<8x896xf32, #tpu.memory_space<vmem>>, vector<8x896xf32>
    %13 = arith.truncf %11 : vector<8x256xf32> to vector<8x256xbf16>
    %c0_9 = arith.constant 0 : index
    %c0_10 = arith.constant 0 : index
    %14 = vector.load %arg9[%c0_9, %c0_10] : memref<256x896xbf16, #tpu.memory_space<vmem>>, vector<256x896xbf16>
    %cst_11 = arith.constant dense<0.000000e+00> : vector<8x896xf32>
    %15 = tpu.matmul %13, %14, %cst_11 {dimension_numbers = #tpu.dot_dimension_numbers<[1], [0], [0], [1], [0, 0, 1, 1], [], []>} : vector<8x256xbf16>, vector<256x896xbf16>, vector<8x896xf32> -> vector<8x896xf32>
    %16 = arith.addf %12, %15 : vector<8x896xf32>
    %c0_12 = arith.constant 0 : index
    %c0_13 = arith.constant 0 : index
    %17 = vector.load %arg13[%c0_12, %c0_13] : memref<8x896xf32, #tpu.memory_space<vmem>>, vector<8x896xf32>
    tpu.vector_store %arg13[%c0_12, %c0_13], %16 {strides = array<i32>} : memref<8x896xf32, #tpu.memory_space<vmem>>, vector<8x896xf32>,
    %c3_i32 = arith.constant 3 : i32
    %18 = arith.cmpi eq, %arg0, %c3_i32 : i32
    %19 = arith.extui %18 : i1 to i32
    %c0_i32_14 = arith.constant 0 : i32
    %20 = arith.cmpi ne, %19, %c0_i32_14 : i32
    scf.if %20 {
      %c0_15 = arith.constant 0 : index
      %c0_16 = arith.constant 0 : index
      %21 = vector.load %arg13[%c0_15, %c0_16] : memref<8x896xf32, #tpu.memory_space<vmem>>, vector<8x896xf32>
      %22 = math.tanh %21 : vector<8x896xf32>
      %c0_17 = arith.constant 0 : index
      %c0_18 = arith.constant 0 : index
      %23 = vector.load %arg11[%c0_17, %c0_18] : memref<8x896xf32, #tpu.memory_space<vmem>>, vector<8x896xf32>
      tpu.vector_store %arg11[%c0_17, %c0_18], %22 {strides = array<i32>} : memref<8x896xf32, #tpu.memory_space<vmem>>, vector<8x896xf32>,
    } else {
    }
    return
  }
  func.func @transform_0(%arg0: i32) -> (i32, i32) {
    %c0_i32 = arith.constant 0 : i32
    %c0_i32_0 = arith.constant 0 : i32
    %c0_i32_1 = arith.constant 0 : i32
    return %c0_i32, %c0_i32_0 : i32, i32
  }
  func.func @transform_1(%arg0: i32) -> (i32, i32) {
    %c0_i32 = arith.constant 0 : i32
    %c0_i32_0 = arith.constant 0 : i32
    %c0_i32_1 = arith.constant 0 : i32
    return %c0_i32, %c0_i32_0 : i32, i32
  }
  func.func @transform_2(%arg0: i32) -> (i32, i32) {
    %c0_i32 = arith.constant 0 : i32
    %c0_i32_0 = arith.constant 0 : i32
    %c0_i32_1 = arith.constant 0 : i32
    return %c0_i32, %c0_i32_0 : i32, i32
  }
  func.func @transform_3(%arg0: i32) -> (i32, i32) {
    %c0_i32 = arith.constant 0 : i32
    %c0_i32_0 = arith.constant 0 : i32
    %c0_i32_1 = arith.constant 0 : i32
    return %c0_i32, %c0_i32_0 : i32, i32
  }
  func.func @transform_4(%arg0: i32) -> (i32, i32) {
    %c0_i32 = arith.constant 0 : i32
    %c0_i32_0 = arith.constant 0 : i32
    %c0_i32_1 = arith.constant 0 : i32
    return %c0_i32, %c0_i32_0 : i32, i32
  }
  func.func @transform_5(%arg0: i32) -> (i32, i32) {
    %c0_i32 = arith.constant 0 : i32
    %c0_i32_0 = arith.constant 0 : i32
    %c0_i32_1 = arith.constant 0 : i32
    return %c0_i32, %c0_i32_0 : i32, i32
  }
  func.func @transform_6(%arg0: i32) -> (i32, i32) {
    %c0_i32 = arith.constant 0 : i32
    %c0_i32_0 = arith.constant 0 : i32
    return %c0_i32, %arg0 : i32, i32
  }
  func.func @transform_7(%arg0: i32) -> (i32, i32) {
    %c0_i32 = arith.constant 0 : i32
    %c0_i32_0 = arith.constant 0 : i32
    return %c0_i32, %arg0 : i32, i32
  }
  func.func @transform_8(%arg0: i32) -> (i32, i32) {
    %c0_i32 = arith.constant 0 : i32
    %c0_i32_0 = arith.constant 0 : i32
    return %arg0, %c0_i32 : i32, i32
  }
  func.func @transform_9(%arg0: i32) -> (i32, i32) {
    %c0_i32 = arith.constant 0 : i32
    %c0_i32_0 = arith.constant 0 : i32
    %c0_i32_1 = arith.constant 0 : i32
    return %c0_i32, %c0_i32_0 : i32, i32
  }
  func.func @transform_10(%arg0: i32) -> (i32, i32) {
    %c0_i32 = arith.constant 0 : i32
    %c0_i32_0 = arith.constant 0 : i32
    %c0_i32_1 = arith.constant 0 : i32
    return %c0_i32, %c0_i32_0 : i32, i32
  }
}

</mosaic_0001>

<llo_original>
// kernel: tpu_custom_call.1
$region0: #{tpu_custom_call.1}
  #allocation0 [shape = 'u32[]', space=smem, size = 0x4, offset = 0x4, fixed_abs, tag = 'smem constant byte address 0x4 - core index']
  #allocation1 [shape = 'u32[72,128]{1,0:T(1,128)}', space=vmem, size = 0x9000, scoped, tag = 'internal scratch']
  #allocation2 [shape = 'bf16[8,512]{1,0:T(8,128)(2,1)}', space=vmem, size = 0x2000, scoped, tag = 'scratch operand']
  #allocation3 [shape = 'f32[8,896]{1,0:T(8,128)}', space=vmem, size = 0x7000, scoped, tag = 'scratch operand']
  %s0 = inlined_call_operand.vmem [shape: s32[8,1], index: 0, kind: input, shape index: {}]
  %s1 = inlined_call_operand.hbm [shape: f32[10,10], index: 1, kind: input, shape index: {}]
  %s2 = inlined_call_operand.hbm [shape: bf16[10,256], index: 2, kind: input, shape index: {}]
  %s3 = inlined_call_operand.hbm [shape: f32[1,256], index: 3, kind: input, shape index: {}]
  %s4 = inlined_call_operand.hbm [shape: bf16[256,512], index: 4, kind: input, shape index: {}]
  %s5 = inlined_call_operand.hbm [shape: f32[1,512], index: 5, kind: input, shape index: {}]
  %s6 = inlined_call_operand.hbm [shape: bf16[512,1024], index: 6, kind: input, shape index: {}]
  %s7 = inlined_call_operand.hbm [shape: f32[1,1024], index: 7, kind: input, shape index: {}]
  %s8 = inlined_call_operand.hbm [shape: bf16[1024,896], index: 8, kind: input, shape index: {}]
  %s9 = inlined_call_operand.hbm [shape: f32[1,896], index: 9, kind: input, shape index: {}]
  %s10 = inlined_call_operand.hbm [shape: f32[8,896], index: 10, kind: output, shape index: {}]
  %s11 = sld [smem:[#allocation0]]
  $region117: #{tpu_custom_call.1} parent=0
    _
  %s13 = ssub.s32 1, %s11
  %s14 = scalar_select 0, %s13, %s11
  $region1: #{tpu_custom_call.1} parent=0
    #allocation4 [shape = 'u8[8192]{0}', space=vmem, size = 0x2000, scoped, tag = 'input window, operand 1, single buffered']
    #allocation5 [shape = 's32[2]{0}', space=sflag, size = 0x8, scoped, tag = 'scoped memory for tpu_custom_call.1']
    #allocation6 [shape = 's32[2]{0}', space=sflag, size = 0x8, scoped, tag = 'scoped memory for tpu_custom_call.1']
    #allocation7 [shape = 'u8[8192]{0}', space=vmem, size = 0x2000, scoped, tag = 'input window, operand 2, single buffered']
    #allocation8 [shape = 's32[1]{0}', space=sflag, size = 0x4, scoped, tag = 'scoped memory for tpu_custom_call.1']
    #allocation9 [shape = 'u8[1024]{0}', space=vmem, size = 0x400, scoped, tag = 'input window, operand 3, single buffered']
    #allocation10 [shape = 'u8[262144]{0}', space=vmem, size = 0x40000, scoped, tag = 'input window, operand 4, single buffered']
    #allocation11 [shape = 's32[1]{0}', space=sflag, size = 0x4, scoped, tag = 'scoped memory for tpu_custom_call.1']
    #allocation12 [shape = 'u8[2048]{0}', space=vmem, size = 0x800, scoped, tag = 'input window, operand 5, single buffered']
    #allocation13 [shape = 'u8[524288]{0}', space=vmem, size = 0x80000, scoped, tag = 'input window, operand 6']
    #allocation14 [shape = 's32[2]{0}', space=sflag, size = 0x8, scoped, tag = 'scoped memory for tpu_custom_call.1']
    #allocation15 [shape = 'u8[2048]{0}', space=vmem, size = 0x800, scoped, tag = 'input window, operand 7']
    #allocation16 [shape = 'u8[917504]{0}', space=vmem, size = 0xe0000, scoped, tag = 'input window, operand 8']
    #allocation17 [shape = 's32[2]{0}', space=sflag, size = 0x8, scoped, tag = 'scoped memory for tpu_custom_call.1']
    #allocation18 [shape = 'u8[3584]{0}', space=vmem, size = 0x1000, scoped, tag = 'input window, operand 9, single buffered']
    #allocation19 [shape = 'u8[28672]{0}', space=vmem, size = 0x7000, scoped, tag = 'output window, operand 0, single buffered']
    %15 = vsyncpa [#allocation5], 0
    %16 = vsyncpa [#allocation8], 0
    %17 = vsyncpa [#allocation11], 0
    %18 = vsyncpa [#allocation14], 0
    %s19 = scalar_lea.sflag [#allocation14], 1
    %20 = vsyncpa %s19, 0
    %21 = vsyncpa [#allocation17], 0
    %s22 = scalar_lea.sflag [#allocation17], 1
    %23 = vsyncpa %s22, 0
    %24 = vsyncpa [#allocation6], 0
    loop: start=0, step=1, limit=6
    $region2: #{tpu_custom_call.1} parent=1 // loop_pre_header
      _
    $region3: #{tpu_custom_call.1} parent=1 // loop_header
      %s26 = sphi 0, %s30
      %p27 = scmp.ge.s32.totalorder %s26, 6
      %s34 = sphi 0, %s34
      %s36 = sphi 0, %s34
      %s37 = sphi 0, %s36
      %s51 = sphi 0, %s37
      %s55 = sphi 0, %s55
      %s57 = sphi 0, %s55
      %s58 = sphi 0, %s57
      %s72 = sphi 0, %s58
      %s76 = sphi 0, %s76
      %s78 = sphi 0, %s76
      %s79 = sphi 0, %s78
      %s93 = sphi 0, %s79
      %s97 = sphi 0, %s97
      %s99 = sphi 0, %s97
      %s100 = sphi 0, %s99
      %s114 = sphi 0, %s100
      %s118 = sphi 0, %s118
      %s120 = sphi 0, %s118
      %s121 = sphi 0, %s120
      %s135 = sphi 0, %s121
      %s139 = sphi 0, %s139
      %s141 = sphi 0, %s139
      %s142 = sphi 0, %s141
      %s156 = sphi 0, %s142
      %s162 = sphi 0, %s164
      %s165 = sphi 0, %s162
      %s166 = sphi 0, %s165
      %s182 = sphi 0, %s166
      %s188 = sphi 0, %s190
      %s191 = sphi 0, %s188
      %s192 = sphi 0, %s191
      %s208 = sphi 0, %s192
      %s214 = sphi 0, %s216
      %s217 = sphi 0, %s214
      %s218 = sphi 0, %s217
      %s234 = sphi 0, %s218
      %s238 = sphi 0, %s238
      %s240 = sphi 0, %s238
      %s241 = sphi 0, %s240
      %s255 = sphi 0, %s241
      %s259 = sphi 0, %s259
      %s261 = sphi 0, %s259
      %s262 = sphi 0, %s261
      %s276 = sphi 0, %s262
    $region4: #{tpu_custom_call.1} parent=1 // loop_header_branch
      %29 = sbr.rel (%p27) target = $region8
    $region5: #{tpu_custom_call.1} parent=1 // loop_body
      %s31 = ssub.s32 %s26, 1
      %s32 = ssub.s32 %s26, 2
      %s33 = sadd.s32 %s26, 1
      %s35 = sadd.s32 %s34, 1
      %p38 = scmp.eq.s32.totalorder %s26, 3
      %p39 = scmp.ne.s32.totalorder %s34, %s36
      %p40 = scmp.eq.s32.totalorder %s26, 0
      %p41 = por %p39, %p40
      %p42 = scmp.ne.s32.totalorder %s34, %s36
      %p43 = scmp.eq.s32.totalorder %s31, 3
      %p44 = por %p42, %p43
      %p45 = scmp.ne.s32.totalorder %s36, %s37
      %p46 = scmp.eq.s32.totalorder %s31, 0
      %p47 = por %p45, %p46
      %p48 = scmp.ne.s32.totalorder %s36, %s37
      %p49 = scmp.eq.s32.totalorder %s32, 3
      %p50 = por %p48, %p49
      %p52 = scmp.ne.s32.totalorder %s37, %s51
      %p53 = scmp.eq.s32.totalorder %s32, 0
      %p54 = por %p52, %p53
      %s56 = sadd.s32 %s55, 1
      %p59 = scmp.eq.s32.totalorder %s26, 3
      %p60 = scmp.ne.s32.totalorder %s55, %s57
      %p61 = scmp.eq.s32.totalorder %s26, 0
      %p62 = por %p60, %p61
      %p63 = scmp.ne.s32.totalorder %s55, %s57
      %p64 = scmp.eq.s32.totalorder %s31, 3
      %p65 = por %p63, %p64
      %p66 = scmp.ne.s32.totalorder %s57, %s58
      %p67 = scmp.eq.s32.totalorder %s31, 0
      %p68 = por %p66, %p67
      %p69 = scmp.ne.s32.totalorder %s57, %s58
      %p70 = scmp.eq.s32.totalorder %s32, 3
      %p71 = por %p69, %p70
      %p73 = scmp.ne.s32.totalorder %s58, %s72
      %p74 = scmp.eq.s32.totalorder %s32, 0
      %p75 = por %p73, %p74
      %s77 = sadd.s32 %s76, 1
      %p80 = scmp.eq.s32.totalorder %s26, 3
      %p81 = scmp.ne.s32.totalorder %s76, %s78
      %p82 = scmp.eq.s32.totalorder %s26, 0
      %p83 = por %p81, %p82
      %p84 = scmp.ne.s32.totalorder %s76, %s78
      %p85 = scmp.eq.s32.totalorder %s31, 3
      %p86 = por %p84, %p85
      %p87 = scmp.ne.s32.totalorder %s78, %s79
      %p88 = scmp.eq.s32.totalorder %s31, 0
      %p89 = por %p87, %p88
      %p90 = scmp.ne.s32.totalorder %s78, %s79
      %p91 = scmp.eq.s32.totalorder %s32, 3
      %p92 = por %p90, %p91
      %p94 = scmp.ne.s32.totalorder %s79, %s93
      %p95 = scmp.eq.s32.totalorder %s32, 0
      %p96 = por %p94, %p95
      %s98 = sadd.s32 %s97, 1
      %p101 = scmp.eq.s32.totalorder %s26, 3
      %p102 = scmp.ne.s32.totalorder %s97, %s99
      %p103 = scmp.eq.s32.totalorder %s26, 0
      %p104 = por %p102, %p103
      %p105 = scmp.ne.s32.totalorder %s97, %s99
      %p106 = scmp.eq.s32.totalorder %s31, 3
      %p107 = por %p105, %p106
      %p108 = scmp.ne.s32.totalorder %s99, %s100
      %p109 = scmp.eq.s32.totalorder %s31, 0
      %p110 = por %p108, %p109
      %p111 = scmp.ne.s32.totalorder %s99, %s100
      %p112 = scmp.eq.s32.totalorder %s32, 3
      %p113 = por %p111, %p112
      %p115 = scmp.ne.s32.totalorder %s100, %s114
      %p116 = scmp.eq.s32.totalorder %s32, 0
      %p117 = por %p115, %p116
      %s119 = sadd.s32 %s118, 1
      %p122 = scmp.eq.s32.totalorder %s26, 3
      %p123 = scmp.ne.s32.totalorder %s118, %s120
      %p124 = scmp.eq.s32.totalorder %s26, 0
      %p125 = por %p123, %p124
      %p126 = scmp.ne.s32.totalorder %s118, %s120
      %p127 = scmp.eq.s32.totalorder %s31, 3
      %p128 = por %p126, %p127
      %p129 = scmp.ne.s32.totalorder %s120, %s121
      %p130 = scmp.eq.s32.totalorder %s31, 0
      %p131 = por %p129, %p130
      %p132 = scmp.ne.s32.totalorder %s120, %s121
      %p133 = scmp.eq.s32.totalorder %s32, 3
      %p134 = por %p132, %p133
      %p136 = scmp.ne.s32.totalorder %s121, %s135
      %p137 = scmp.eq.s32.totalorder %s32, 0
      %p138 = por %p136, %p137
      %s140 = sadd.s32 %s139, 1
      %p143 = scmp.eq.s32.totalorder %s26, 3
      %p144 = scmp.ne.s32.totalorder %s139, %s141
      %p145 = scmp.eq.s32.totalorder %s26, 0
      %p146 = por %p144, %p145
      %p147 = scmp.ne.s32.totalorder %s139, %s141
      %p148 = scmp.eq.s32.totalorder %s31, 3
      %p149 = por %p147, %p148
      %p150 = scmp.ne.s32.totalorder %s141, %s142
      %p151 = scmp.eq.s32.totalorder %s31, 0
      %p152 = por %p150, %p151
      %p153 = scmp.ne.s32.totalorder %s141, %s142
      %p154 = scmp.eq.s32.totalorder %s32, 3
      %p155 = por %p153, %p154
      %p157 = scmp.ne.s32.totalorder %s142, %s156
      %p158 = scmp.eq.s32.totalorder %s32, 0
      %p159 = por %p157, %p158
      %s160 = ssub.s32 %s26, %s33
      %p161 = scmp.eq.s32.totalorder %s160, 0
      %s163 = sadd.s32 %s162, 1
      %s164 = scalar_select %p161, %s162, %s163
      %p167 = pneg %p161
      %p168 = scmp.eq.s32.totalorder %s26, 3
      %p169 = por %p167, %p168
      %p170 = scmp.ne.s32.totalorder %s162, %s165
      %p171 = scmp.eq.s32.totalorder %s26, 0
      %p172 = por %p170, %p171
      %p173 = scmp.ne.s32.totalorder %s162, %s165
      %p174 = scmp.eq.s32.totalorder %s31, 3
      %p175 = por %p173, %p174
      %p176 = scmp.ne.s32.totalorder %s165, %s166
      %p177 = scmp.eq.s32.totalorder %s31, 0
      %p178 = por %p176, %p177
      %p179 = scmp.ne.s32.totalorder %s165, %s166
      %p180 = scmp.eq.s32.totalorder %s32, 3
      %p181 = por %p179, %p180
      %p183 = scmp.ne.s32.totalorder %s166, %s182
      %p184 = scmp.eq.s32.totalorder %s32, 0
      %p185 = por %p183, %p184
      %s186 = ssub.s32 %s26, %s33
      %p187 = scmp.eq.s32.totalorder %s186, 0
      %s189 = sadd.s32 %s188, 1
      %s190 = scalar_select %p187, %s188, %s189
      %p193 = pneg %p187
      %p194 = scmp.eq.s32.totalorder %s26, 3
      %p195 = por %p193, %p194
      %p196 = scmp.ne.s32.totalorder %s188, %s191
      %p197 = scmp.eq.s32.totalorder %s26, 0
      %p198 = por %p196, %p197
      %p199 = scmp.ne.s32.totalorder %s188, %s191
      %p200 = scmp.eq.s32.totalorder %s31, 3
      %p201 = por %p199, %p200
      %p202 = scmp.ne.s32.totalorder %s191, %s192
      %p203 = scmp.eq.s32.totalorder %s31, 0
      %p204 = por %p202, %p203
      %p205 = scmp.ne.s32.totalorder %s191, %s192
      %p206 = scmp.eq.s32.totalorder %s32, 3
      %p207 = por %p205, %p206
      %p209 = scmp.ne.s32.totalorder %s192, %s208
      %p210 = scmp.eq.s32.totalorder %s32, 0
      %p211 = por %p209, %p210
      %s212 = ssub.s32 %s26, %s33
      %p213 = scmp.eq.s32.totalorder %s212, 0
      %s215 = sadd.s32 %s214, 1
      %s216 = scalar_select %p213, %s214, %s215
      %p219 = pneg %p213
      %p220 = scmp.eq.s32.totalorder %s26, 3
      %p221 = por %p219, %p220
      %p222 = scmp.ne.s32.totalorder %s214, %s217
      %p223 = scmp.eq.s32.totalorder %s26, 0
      %p224 = por %p222, %p223
      %p225 = scmp.ne.s32.totalorder %s214, %s217
      %p226 = scmp.eq.s32.totalorder %s31, 3
      %p227 = por %p225, %p226
      %p228 = scmp.ne.s32.totalorder %s217, %s218
      %p229 = scmp.eq.s32.totalorder %s31, 0
      %p230 = por %p228, %p229
      %p231 = scmp.ne.s32.totalorder %s217, %s218
      %p232 = scmp.eq.s32.totalorder %s32, 3
      %p233 = por %p231, %p232
      %p235 = scmp.ne.s32.totalorder %s218, %s234
      %p236 = scmp.eq.s32.totalorder %s32, 0
      %p237 = por %p235, %p236
      %s239 = sadd.s32 %s238, 1
      %p242 = scmp.eq.s32.totalorder %s26, 3
      %p243 = scmp.ne.s32.totalorder %s238, %s240
      %p244 = scmp.eq.s32.totalorder %s26, 0
      %p245 = por %p243, %p244
      %p246 = scmp.ne.s32.totalorder %s238, %s240
      %p247 = scmp.eq.s32.totalorder %s31, 3
      %p248 = por %p246, %p247
      %p249 = scmp.ne.s32.totalorder %s240, %s241
      %p250 = scmp.eq.s32.totalorder %s31, 0
      %p251 = por %p249, %p250
      %p252 = scmp.ne.s32.totalorder %s240, %s241
      %p253 = scmp.eq.s32.totalorder %s32, 3
      %p254 = por %p252, %p253
      %p256 = scmp.ne.s32.totalorder %s241, %s255
      %p257 = scmp.eq.s32.totalorder %s32, 0
      %p258 = por %p256, %p257
      %s260 = sadd.s32 %s259, 1
      %p263 = scmp.eq.s32.totalorder %s26, 3
      %p264 = scmp.ne.s32.totalorder %s259, %s261
      %p265 = scmp.eq.s32.totalorder %s26, 0
      %p266 = por %p264, %p265
      %p267 = scmp.ne.s32.totalorder %s259, %s261
      %p268 = scmp.eq.s32.totalorder %s31, 3
      %p269 = por %p267, %p268
      %p270 = scmp.ne.s32.totalorder %s261, %s262
      %p271 = scmp.eq.s32.totalorder %s31, 0
      %p272 = por %p270, %p271
      %p273 = scmp.ne.s32.totalorder %s261, %s262
      %p274 = scmp.eq.s32.totalorder %s32, 3
      %p275 = por %p273, %p274
      %p277 = scmp.ne.s32.totalorder %s262, %s276
      %p278 = scmp.eq.s32.totalorder %s32, 0
      %p279 = por %p277, %p278
      %p280 = scmp.le.s32.totalorder 1, %s26
      %p281 = scmp.lt.s32.totalorder %s26, 5
      %p282 = pnand %p280, %p281
      %p283 = pneg %p282
      // Predicated region
      $region9: #{tpu_custom_call.1} parent=5 // pred_check
        _
      $region10: #{tpu_custom_call.1} parent=5 // pred_check_branch
        %285 = sbr.rel (%p282) target = $region12
      $region11: #{tpu_custom_call.1} parent=5 // pred_region
        %s286 = ssub.s32 %s26, 1
        // Predicated region
        $region13: #{tpu_custom_call.1} parent=11 // pred_check
          %p287 = pneg %p47
        $region14: #{tpu_custom_call.1} parent=11 // pred_check_branch
          %289 = sbr.rel (%p287) target = $region16
        $region15: #{tpu_custom_call.1} parent=11 // pred_region
          _
        $region16: #{tpu_custom_call.1} parent=11 // pred_fallthru
          _
        // Predicated region
        $region17: #{tpu_custom_call.1} parent=11 // pred_check
          %p290 = pneg %p68
        $region18: #{tpu_custom_call.1} parent=11 // pred_check_branch
          %292 = sbr.rel (%p290) target = $region20
        $region19: #{tpu_custom_call.1} parent=11 // pred_region
          %294 = vsyncadd [#allocation5], 0
          %s295 = sshll.u32 %s1, 4
          %s296 = int_to_ptr.hbm [resolvable:$true] %s295
          %s297 = sshll.u32 [#allocation4], 4
          %s298 = int_to_ptr.vmem [resolvable:$true] %s297
          %303 = dma.hbm_to_vmem [thread:$0]  %s296, 256, %s298, [#allocation5], 128, 128, 8
        $region20: #{tpu_custom_call.1} parent=11 // pred_fallthru
          _
        // Predicated region
        $region21: #{tpu_custom_call.1} parent=11 // pred_check
          %p304 = pneg %p89
        $region22: #{tpu_custom_call.1} parent=11 // pred_check_branch
          %306 = sbr.rel (%p304) target = $region24
        $region23: #{tpu_custom_call.1} parent=11 // pred_region
          %308 = vsyncadd [#allocation8], 0
          %s309 = sshll.u32 %s2, 4
          %s310 = int_to_ptr.hbm [resolvable:$true] %s309
          %s311 = sshll.u32 [#allocation7], 4
          %s312 = int_to_ptr.vmem [resolvable:$true] %s311
          %317 = dma.hbm_to_vmem [thread:$0]  %s310, 256, %s312, [#allocation8], 128, 128, 8
        $region24: #{tpu_custom_call.1} parent=11 // pred_fallthru
          _
        // Predicated region
        $region25: #{tpu_custom_call.1} parent=11 // pred_check
          %p318 = pneg %p110
        $region26: #{tpu_custom_call.1} parent=11 // pred_check_branch
          %320 = sbr.rel (%p318) target = $region28
        $region27: #{tpu_custom_call.1} parent=11 // pred_region
          %322 = vsyncadd [#allocation8], 0
          %s324 = sshll.u32 %s3, 4
          %s325 = int_to_ptr.hbm [resolvable:$true] %s324
          %s326 = sshll.u32 [#allocation9], 4
          %s327 = int_to_ptr.vmem [resolvable:$true] %s326
          %329 = dma.hbm_to_vmem [thread:$0]  %s325, 32, %s327, [#allocation8]
        $region28: #{tpu_custom_call.1} parent=11 // pred_fallthru
          _
        // Predicated region
        $region29: #{tpu_custom_call.1} parent=11 // pred_check
          %p330 = pneg %p131
        $region30: #{tpu_custom_call.1} parent=11 // pred_check_branch
          %332 = sbr.rel (%p330) target = $region32
        $region31: #{tpu_custom_call.1} parent=11 // pred_region
          %334 = vsyncadd [#allocation11], 0
          %s335 = sshll.u32 %s4, 4
          %s336 = int_to_ptr.hbm [resolvable:$true] %s335
          %s337 = sshll.u32 [#allocation10], 4
          %s338 = int_to_ptr.vmem [resolvable:$true] %s337
          %343 = dma.hbm_to_vmem [thread:$0]  %s336, 8192, %s338, [#allocation11], 256, 256, 16
        $region32: #{tpu_custom_call.1} parent=11 // pred_fallthru
          _
        // Predicated region
        $region33: #{tpu_custom_call.1} parent=11 // pred_check
          %p344 = pneg %p152
        $region34: #{tpu_custom_call.1} parent=11 // pred_check_branch
          %346 = sbr.rel (%p344) target = $region36
        $region35: #{tpu_custom_call.1} parent=11 // pred_region
          %348 = vsyncadd [#allocation11], 0
          %s350 = sshll.u32 %s5, 4
          %s351 = int_to_ptr.hbm [resolvable:$true] %s350
          %s352 = sshll.u32 [#allocation12], 4
          %s353 = int_to_ptr.vmem [resolvable:$true] %s352
          %355 = dma.hbm_to_vmem [thread:$0]  %s351, 64, %s353, [#allocation11]
        $region36: #{tpu_custom_call.1} parent=11 // pred_fallthru
          _
        // Predicated region
        $region37: #{tpu_custom_call.1} parent=11 // pred_check
          %p356 = pneg %p251
        $region38: #{tpu_custom_call.1} parent=11 // pred_check_branch
          %358 = sbr.rel (%p356) target = $region40
        $region39: #{tpu_custom_call.1} parent=11 // pred_region
          %360 = vsyncadd [#allocation17], 0
          %s362 = sshll.u32 %s9, 4
          %s363 = int_to_ptr.hbm [resolvable:$true] %s362
          %s364 = sshll.u32 [#allocation18], 4
          %s365 = int_to_ptr.vmem [resolvable:$true] %s364
          %367 = dma.hbm_to_vmem [thread:$0]  %s363, 112, %s365, [#allocation17]
        $region40: #{tpu_custom_call.1} parent=11 // pred_fallthru
          _
      $region12: #{tpu_custom_call.1} parent=5 // pred_fallthru
        _
      %p368 = scmp.lt.s32.totalorder %s26, 4
      // Predicated region
      $region41: #{tpu_custom_call.1} parent=5 // pred_check
        %p369 = pneg %p368
      $region42: #{tpu_custom_call.1} parent=5 // pred_check_branch
        %371 = sbr.rel (%p369) target = $region44
      $region43: #{tpu_custom_call.1} parent=5 // pred_region
        // Predicated region
        $region45: #{tpu_custom_call.1} parent=43 // pred_check
          %p372 = pneg %p172
        $region46: #{tpu_custom_call.1} parent=43 // pred_check_branch
          %374 = sbr.rel (%p372) target = $region48
        $region47: #{tpu_custom_call.1} parent=43 // pred_region
          %s375 = sand.u32 %s26, 1
          %s376 = scalar_lea.sflag [#allocation14], %s375
          %s377 = sand.u32 %s162, 1
          %s378 = smul.addr %s377, 512
          %s379 = scalar_lea.vmem [#allocation13], %s378
          %s380 = smul.u32 2, %s26
          %382 = vsyncadd %s376, 0
          %s383 = smul.addr %s380, 4
          %s384 = scalar_lea.hbm %s6, %s383
          %s385 = sshll.u32 %s384, 4
          %s386 = int_to_ptr.hbm [resolvable:$true] %s385
          %s387 = sshll.u32 %s379, 4
          %s388 = int_to_ptr.vmem [resolvable:$true] %s387
          %393 = dma.hbm_to_vmem [thread:$0]  %s386, 8192, %s388, %s376, 512, 128, 8
        $region48: #{tpu_custom_call.1} parent=43 // pred_fallthru
          _
        // Predicated region
        $region49: #{tpu_custom_call.1} parent=43 // pred_check
          %p394 = pneg %p198
        $region50: #{tpu_custom_call.1} parent=43 // pred_check_branch
          %396 = sbr.rel (%p394) target = $region52
        $region51: #{tpu_custom_call.1} parent=43 // pred_region
          %s397 = sand.u32 %s26, 1
          %s398 = scalar_lea.sflag [#allocation14], %s397
          %s399 = sand.u32 %s188, 1
          %s400 = smul.addr %s399, 2
          %s401 = scalar_lea.vmem [#allocation15], %s400
          %s402 = smul.u32 2, %s26
          %404 = vsyncadd %s398, 0
          %s405 = scalar_lea.hbm %s7, %s402
          %s407 = sshll.u32 %s405, 4
          %s408 = int_to_ptr.hbm [resolvable:$true] %s407
          %s409 = sshll.u32 %s401, 4
          %s410 = int_to_ptr.vmem [resolvable:$true] %s409
          %412 = dma.hbm_to_vmem [thread:$0]  %s408, 32, %s410, %s398
        $region52: #{tpu_custom_call.1} parent=43 // pred_fallthru
          _
        // Predicated region
        $region53: #{tpu_custom_call.1} parent=43 // pred_check
          %p413 = pneg %p224
        $region54: #{tpu_custom_call.1} parent=43 // pred_check_branch
          %415 = sbr.rel (%p413) target = $region56
        $region55: #{tpu_custom_call.1} parent=43 // pred_region
          %s416 = sand.u32 %s26, 1
          %s417 = scalar_lea.sflag [#allocation17], %s416
          %s418 = sand.u32 %s214, 1
          %s419 = smul.addr %s418, 896
          %s420 = scalar_lea.vmem [#allocation16], %s419
          %s421 = smul.u32 32, %s26
          %423 = vsyncadd %s417, 0
          %s424 = smul.addr %s421, 7
          %s425 = smul.addr %s424, 4
          %s426 = scalar_lea.hbm %s8, %s425
          %s427 = sshll.u32 %s426, 4
          %s428 = int_to_ptr.hbm [resolvable:$true] %s427
          %s429 = sshll.u32 %s420, 4
          %s430 = int_to_ptr.vmem [resolvable:$true] %s429
          %435 = dma.hbm_to_vmem [thread:$0]  %s428, 14336, %s430, %s417, 448, 448, 28
        $region56: #{tpu_custom_call.1} parent=43 // pred_fallthru
          _
      $region44: #{tpu_custom_call.1} parent=5 // pred_fallthru
        _
      %p436 = scmp.le.s32.totalorder 1, %s26
      %p437 = scmp.lt.s32.totalorder %s26, 5
      %p438 = pnand %p436, %p437
      %p439 = pneg %p438
      // Predicated region
      $region57: #{tpu_custom_call.1} parent=5 // pred_check
        _
      $region58: #{tpu_custom_call.1} parent=5 // pred_check_branch
        %441 = sbr.rel (%p438) target = $region60
      $region59: #{tpu_custom_call.1} parent=5 // pred_region
        %s442 = ssub.s32 %s26, 1
        // Predicated region
        $region61: #{tpu_custom_call.1} parent=59 // pred_check
          %p443 = pneg %p68
        $region62: #{tpu_custom_call.1} parent=59 // pred_check_branch
          %445 = sbr.rel (%p443) target = $region64
        $region63: #{tpu_custom_call.1} parent=59 // pred_region
          %447 = dma.done [#allocation5], 256
        $region64: #{tpu_custom_call.1} parent=59 // pred_fallthru
          _
        // Predicated region
        $region65: #{tpu_custom_call.1} parent=59 // pred_check
          %p448 = pneg %p89
        $region66: #{tpu_custom_call.1} parent=59 // pred_check_branch
          %450 = sbr.rel (%p448) target = $region68
        $region67: #{tpu_custom_call.1} parent=59 // pred_region
          %452 = dma.done [#allocation8], 256
        $region68: #{tpu_custom_call.1} parent=59 // pred_fallthru
          _
        // Predicated region
        $region69: #{tpu_custom_call.1} parent=59 // pred_check
          %p453 = pneg %p110
        $region70: #{tpu_custom_call.1} parent=59 // pred_check_branch
          %455 = sbr.rel (%p453) target = $region72
        $region71: #{tpu_custom_call.1} parent=59 // pred_region
          %457 = dma.done [#allocation8], 32
        $region72: #{tpu_custom_call.1} parent=59 // pred_fallthru
          _
        // Predicated region
        $region73: #{tpu_custom_call.1} parent=59 // pred_check
          %p458 = pneg %p131
        $region74: #{tpu_custom_call.1} parent=59 // pred_check_branch
          %460 = sbr.rel (%p458) target = $region76
        $region75: #{tpu_custom_call.1} parent=59 // pred_region
          %462 = dma.done [#allocation11], 8192
        $region76: #{tpu_custom_call.1} parent=59 // pred_fallthru
          _
        // Predicated region
        $region77: #{tpu_custom_call.1} parent=59 // pred_check
          %p463 = pneg %p152
        $region78: #{tpu_custom_call.1} parent=59 // pred_check_branch
          %465 = sbr.rel (%p463) target = $region80
        $region79: #{tpu_custom_call.1} parent=59 // pred_region
          %467 = dma.done [#allocation11], 64
        $region80: #{tpu_custom_call.1} parent=59 // pred_fallthru
          _
        %s468 = sand.u32 %s31, 1
        %s469 = scalar_lea.sflag [#allocation14], %s468
        %s470 = sand.u32 %s165, 1
        %s471 = smul.addr %s470, 512
        %s472 = scalar_lea.vmem [#allocation13], %s471
        // Predicated region
        $region81: #{tpu_custom_call.1} parent=59 // pred_check
          %p473 = pneg %p178
        $region82: #{tpu_custom_call.1} parent=59 // pred_check_branch
          %475 = sbr.rel (%p473) target = $region84
        $region83: #{tpu_custom_call.1} parent=59 // pred_region
          %477 = dma.done %s469, 8192
        $region84: #{tpu_custom_call.1} parent=59 // pred_fallthru
          _
        %s478 = sand.u32 %s31, 1
        %s479 = scalar_lea.sflag [#allocation14], %s478
        %s480 = sand.u32 %s191, 1
        %s481 = smul.addr %s480, 2
        %s482 = scalar_lea.vmem [#allocation15], %s481
        // Predicated region
        $region85: #{tpu_custom_call.1} parent=59 // pred_check
          %p483 = pneg %p204
        $region86: #{tpu_custom_call.1} parent=59 // pred_check_branch
          %485 = sbr.rel (%p483) target = $region88
        $region87: #{tpu_custom_call.1} parent=59 // pred_region
          %487 = dma.done %s479, 32
        $region88: #{tpu_custom_call.1} parent=59 // pred_fallthru
          _
        %s488 = sand.u32 %s31, 1
        %s489 = scalar_lea.sflag [#allocation17], %s488
        %s490 = sand.u32 %s217, 1
        %s491 = smul.addr %s490, 896
        %s492 = scalar_lea.vmem [#allocation16], %s491
        // Predicated region
        $region89: #{tpu_custom_call.1} parent=59 // pred_check
          %p493 = pneg %p230
        $region90: #{tpu_custom_call.1} parent=59 // pred_check_branch
          %495 = sbr.rel (%p493) target = $region92
        $region91: #{tpu_custom_call.1} parent=59 // pred_region
          %497 = dma.done %s489, 14336
        $region92: #{tpu_custom_call.1} parent=59 // pred_fallthru
          _
        // Predicated region
        $region93: #{tpu_custom_call.1} parent=59 // pred_check
          %p498 = pneg %p251
        $region94: #{tpu_custom_call.1} parent=59 // pred_check_branch
          %500 = sbr.rel (%p498) target = $region96
        $region95: #{tpu_custom_call.1} parent=59 // pred_region
          %502 = dma.done [#allocation17], 112
        $region96: #{tpu_custom_call.1} parent=59 // pred_fallthru
          _
        %p503 = pneg %p47
        %p504 = pneg %p44
        %p505 = pneg %p68
        %p506 = pneg %p65
        %p507 = pneg %p89
        %p508 = pneg %p86
        %p509 = pneg %p110
        %p510 = pneg %p107
        %p511 = pneg %p131
        %p512 = pneg %p128
        %p513 = pneg %p152
        %p514 = pneg %p149
        %s515 = sand.u32 %s31, 1
        %s516 = scalar_lea.sflag [#allocation14], %s515
        %s517 = sand.u32 %s165, 1
        %s518 = smul.addr %s517, 512
        %s519 = scalar_lea.vmem [#allocation13], %s518
        %p520 = pneg %p178
        %p521 = pneg %p175
        %s522 = sand.u32 %s31, 1
        %s523 = scalar_lea.sflag [#allocation14], %s522
        %s524 = sand.u32 %s191, 1
        %s525 = smul.addr %s524, 2
        %s526 = scalar_lea.vmem [#allocation15], %s525
        %p527 = pneg %p204
        %p528 = pneg %p201
        %s529 = sand.u32 %s31, 1
        %s530 = scalar_lea.sflag [#allocation17], %s529
        %s531 = sand.u32 %s217, 1
        %s532 = smul.addr %s531, 896
        %s533 = scalar_lea.vmem [#allocation16], %s532
        %p534 = pneg %p230
        %p535 = pneg %p227
        %p536 = pneg %p251
        %p537 = pneg %p248
        %p538 = pneg %p272
        %p539 = pneg %p269
        %s540 = smul.u32 2, %s31
        %s541 = smul.u32 2, %s31
        %s542 = smul.u32 32, %s31
        %p544 = scmp.eq.s32.totalorder %s31, 0
        // Predicated region
        $region97: #{tpu_custom_call.1} parent=59 // pred_check
          %p545 = pneg %p544
        $region98: #{tpu_custom_call.1} parent=59 // pred_check_branch
          %547 = sbr.rel (%p545) target = $region100
        $region99: #{tpu_custom_call.1} parent=59 // pred_region
          %v548 = vlaneseq
          %v549 = vand.u32 %v548, 127
          %v550 = vld [vmem:[%s0] sm:$0xff]
          %551 = vset.pattern.permute.xlu0 0
          %552 = vperm.xlu0 %551, %v550
          %v553 = vpop.permute.xlu0 %552
          %vm554 = vcmp.eq.s32.totalorder %v549, %v553
          %v555 = vsel %vm554, 1, 0
          %v556 = vcvt.s32.f32 %v555
          %v557 = vld [vmem:[#allocation4] sm:$0xff]
          %v558 = vld [vmem:[#allocation4 + $0x8] sm:$0x3]
          %vm559 = vcmask 80896
          %v561 = vsel %vm559, %v556, 0
          %vm563 = vcmask 1041408
          %v565 = vsel %vm563, %v558, 0
          %567 = vmatpush.msra.mxu0 0.0
          %568 = vmatpush.msra.mxu0 0.0
          %569 = vmatpush.msra.mxu0 0.0
          %570 = vmatpush.msra.mxu0 0.0
          %571 = vmatpush.msra.mxu0 0.0
          %572 = vmatpush.msra.mxu0 0.0
          %573 = vmatpush.msra.mxu0 0.0
          %574 = vmatpush.msra.mxu0 0.0
          %575 = vmatpush.msra.mxu0 0.0
          %576 = vmatpush.msra.mxu0 0.0
          %577 = vmatpush.msra.mxu0 0.0
          %578 = vmatpush.msra.mxu0 0.0
          %579 = vmatpush.msra.mxu0 0.0
          %580 = vmatpush.msra.mxu0 0.0
          %581 = vmatpush.msra.mxu0 %v565
          %582 = vmatpush.msra.mxu0 %v557
          %583 = vmatmul.f32.gmra.mxu0 %v561
          %v584 = vpop.f32.mrf.mxu0
          %v585 = vadd.f32 0.0, %v584
          %586 = vdwg.mxu0
          %v587 = vpack.c.bf16 %v585, %v585
          %v588 = vld [vmem:[#allocation7] sm:$0xff]
          %v589 = vld [vmem:[#allocation7 + $0x8] sm:$0x11]
          %v590 = vld [vmem:[#allocation9] sm:$0x3]
          %v592 = vperm.slane %v590, 0
          %v593 = vperm.slane %v590, 1
          %v598 = vunpack.c.l.b16 %v588
          %v599 = vunpack.c.h.b16 %v588
          %v600 = vunpack.c.l.b16 %v589
          %v601 = vunpack.c.h.b16 %v589
          %v602 = vpack.c.b16 %v600, %v598
          %v603 = vpack.c.b16 %v601, %v599
          %v605 = vsel %vm559, %v587, 0
          %vm607 = vcmask 1044480
          %v609 = vsel %vm607, %v602, 0
          %v612 = vsel %vm607, %v603, 0
          %614 = vmatpush.bf16.msra.mxu0 0
          %615 = vmatpush.bf16.msra.mxu0 0
          %616 = vmatpush.bf16.msra.mxu0 0
          %617 = vmatpush.bf16.msra.mxu0 0
          %618 = vmatpush.bf16.msra.mxu0 0
          %619 = vmatpush.bf16.msra.mxu0 0
          %620 = vmatpush.bf16.msra.mxu0 0
          %621 = vmatpush.bf16.msra.mxu0 %v609
          %622 = vmatmul.bf16.gmra.mxu0 %v605
          %v623 = vpop.f32.mrf.mxu0
          %v624 = vadd.f32 %v592, %v623
          %v625 = vpop.f32.mrf.mxu0
          %626 = vdwg.mxu0
          %627 = vmatpush.bf16.msra.mxu0 0
          %628 = vmatpush.bf16.msra.mxu0 0
          %629 = vmatpush.bf16.msra.mxu0 0
          %630 = vmatpush.bf16.msra.mxu0 0
          %631 = vmatpush.bf16.msra.mxu0 0
          %632 = vmatpush.bf16.msra.mxu0 0
          %633 = vmatpush.bf16.msra.mxu0 0
          %634 = vmatpush.bf16.msra.mxu0 %v612
          %635 = vmatmul.bf16.gmra.mxu0 %v605
          %v636 = vpop.f32.mrf.mxu0
          %v637 = vadd.f32 %v593, %v636
          %v638 = vpop.f32.mrf.mxu0
          %639 = vdwg.mxu0
          %v640 = vmul.f32 %v624, 0.2
          %v641 = vmul.f32 %v637, 0.2
          %v642 = vmax.f32 %v624, %v640
          %v643 = vmax.f32 %v637, %v641
          %v644 = vpack.c.bf16 %v642, %v642
          %v645 = vpack.c.bf16 %v643, %v643
          %v646 = vld [vmem:[#allocation10] sm:$0xff]
          %v647 = vld [vmem:[#allocation10 + $0x8] sm:$0xff]
          %v648 = vld [vmem:[#allocation10 + $0x10] sm:$0xff]
          %v649 = vld [vmem:[#allocation10 + $0x18] sm:$0xff]
          %v650 = vld [vmem:[#allocation10 + $0x20] sm:$0xff]
          %v651 = vld [vmem:[#allocation10 + $0x28] sm:$0xff]
          %v652 = vld [vmem:[#allocation10 + $0x30] sm:$0xff]
          %v653 = vld [vmem:[#allocation10 + $0x38] sm:$0xff]
          %v654 = vld [vmem:[#allocation10 + $0x40] sm:$0xff]
          %v655 = vld [vmem:[#allocation10 + $0x48] sm:$0xff]
          %v656 = vld [vmem:[#allocation10 + $0x50] sm:$0xff]
          %v657 = vld [vmem:[#allocation10 + $0x58] sm:$0xff]
          %v658 = vld [vmem:[#allocation10 + $0x60] sm:$0xff]
          %v659 = vld [vmem:[#allocation10 + $0x68] sm:$0xff]
          %v660 = vld [vmem:[#allocation10 + $0x70] sm:$0xff]
          %v661 = vld [vmem:[#allocation10 + $0x78] sm:$0xff]
          %v662 = vld [vmem:[#allocation10 + $0x80] sm:$0xff]
          %v663 = vld [vmem:[#allocation10 + $0x88] sm:$0xff]
          %v664 = vld [vmem:[#allocation10 + $0x90] sm:$0xff]
          %v665 = vld [vmem:[#allocation10 + $0x98] sm:$0xff]
          %v666 = vld [vmem:[#allocation10 + $0xa0] sm:$0xff]
          %v667 = vld [vmem:[#allocation10 + $0xa8] sm:$0xff]
          %v668 = vld [vmem:[#allocation10 + $0xb0] sm:$0xff]
          %v669 = vld [vmem:[#allocation10 + $0xb8] sm:$0xff]
          %v670 = vld [vmem:[#allocation10 + $0xc0] sm:$0xff]
          %v671 = vld [vmem:[#allocation10 + $0xc8] sm:$0xff]
          %v672 = vld [vmem:[#allocation10 + $0xd0] sm:$0xff]
          %v673 = vld [vmem:[#allocation10 + $0xd8] sm:$0xff]
          %v674 = vld [vmem:[#allocation10 + $0xe0] sm:$0xff]
          %v675 = vld [vmem:[#allocation10 + $0xe8] sm:$0xff]
          %v676 = vld [vmem:[#allocation10 + $0xf0] sm:$0xff]
          %v677 = vld [vmem:[#allocation10 + $0xf8] sm:$0xff]
          %v678 = vld [vmem:[#allocation10 + $0x100] sm:$0xff]
          %v679 = vld [vmem:[#allocation10 + $0x108] sm:$0xff]
          %v680 = vld [vmem:[#allocation10 + $0x110] sm:$0xff]
          %v681 = vld [vmem:[#allocation10 + $0x118] sm:$0xff]
          %v682 = vld [vmem:[#allocation10 + $0x120] sm:$0xff]
          %v683 = vld [vmem:[#allocation10 + $0x128] sm:$0xff]
          %v684 = vld [vmem:[#allocation10 + $0x130] sm:$0xff]
          %v685 = vld [vmem:[#allocation10 + $0x138] sm:$0xff]
          %v686 = vld [vmem:[#allocation10 + $0x140] sm:$0xff]
          %v687 = vld [vmem:[#allocation10 + $0x148] sm:$0xff]
          %v688 = vld [vmem:[#allocation10 + $0x150] sm:$0xff]
          %v689 = vld [vmem:[#allocation10 + $0x158] sm:$0xff]
          %v690 = vld [vmem:[#allocation10 + $0x160] sm:$0xff]
          %v691 = vld [vmem:[#allocation10 + $0x168] sm:$0xff]
          %v692 = vld [vmem:[#allocation10 + $0x170] sm:$0xff]
          %v693 = vld [vmem:[#allocation10 + $0x178] sm:$0xff]
          %v694 = vld [vmem:[#allocation10 + $0x180] sm:$0xff]
          %v695 = vld [vmem:[#allocation10 + $0x188] sm:$0xff]
          %v696 = vld [vmem:[#allocation10 + $0x190] sm:$0xff]
          %v697 = vld [vmem:[#allocation10 + $0x198] sm:$0xff]
          %v698 = vld [vmem:[#allocation10 + $0x1a0] sm:$0xff]
          %v699 = vld [vmem:[#allocation10 + $0x1a8] sm:$0xff]
          %v700 = vld [vmem:[#allocation10 + $0x1b0] sm:$0xff]
          %v701 = vld [vmem:[#allocation10 + $0x1b8] sm:$0xff]
          %v702 = vld [vmem:[#allocation10 + $0x1c0] sm:$0xff]
          %v703 = vld [vmem:[#allocation10 + $0x1c8] sm:$0xff]
          %v704 = vld [vmem:[#allocation10 + $0x1d0] sm:$0xff]
          %v705 = vld [vmem:[#allocation10 + $0x1d8] sm:$0xff]
          %v706 = vld [vmem:[#allocation10 + $0x1e0] sm:$0xff]
          %v707 = vld [vmem:[#allocation10 + $0x1e8] sm:$0xff]
          %v708 = vld [vmem:[#allocation10 + $0x1f0] sm:$0xff]
          %v709 = vld [vmem:[#allocation10 + $0x1f8] sm:$0xff]
          %v710 = vld [vmem:[#allocation12] sm:$0xf]
          %v712 = vperm.slane %v710, 0
          %v713 = vperm.slane %v710, 1
          %v714 = vperm.slane %v710, 2
          %v715 = vperm.slane %v710, 3
          %v784 = vunpack.c.l.b16 %v646
          %v785 = vunpack.c.h.b16 %v646
          %v786 = vunpack.c.l.b16 %v647
          %v787 = vunpack.c.h.b16 %v647
          %v788 = vunpack.c.l.b16 %v648
          %v789 = vunpack.c.h.b16 %v648
          %v790 = vunpack.c.l.b16 %v649
          %v791 = vunpack.c.h.b16 %v649
          %v792 = vunpack.c.l.b16 %v650
          %v793 = vunpack.c.h.b16 %v650
          %v794 = vunpack.c.l.b16 %v651
          %v795 = vunpack.c.h.b16 %v651
          %v796 = vunpack.c.l.b16 %v652
          %v797 = vunpack.c.h.b16 %v652
          %v798 = vunpack.c.l.b16 %v653
          %v799 = vunpack.c.h.b16 %v653
          %v800 = vunpack.c.l.b16 %v654
          %v801 = vunpack.c.h.b16 %v654
          %v802 = vunpack.c.l.b16 %v655
          %v803 = vunpack.c.h.b16 %v655
          %v804 = vunpack.c.l.b16 %v656
          %v805 = vunpack.c.h.b16 %v656
          %v806 = vunpack.c.l.b16 %v657
          %v807 = vunpack.c.h.b16 %v657
          %v808 = vunpack.c.l.b16 %v658
          %v809 = vunpack.c.h.b16 %v658
          %v810 = vunpack.c.l.b16 %v659
          %v811 = vunpack.c.h.b16 %v659
          %v812 = vunpack.c.l.b16 %v660
          %v813 = vunpack.c.h.b16 %v660
          %v814 = vunpack.c.l.b16 %v661
          %v815 = vunpack.c.h.b16 %v661
          %v816 = vunpack.c.l.b16 %v662
          %v817 = vunpack.c.h.b16 %v662
          %v818 = vunpack.c.l.b16 %v663
          %v819 = vunpack.c.h.b16 %v663
          %v820 = vunpack.c.l.b16 %v664
          %v821 = vunpack.c.h.b16 %v664
          %v822 = vunpack.c.l.b16 %v665
          %v823 = vunpack.c.h.b16 %v665
          %v824 = vunpack.c.l.b16 %v666
          %v825 = vunpack.c.h.b16 %v666
          %v826 = vunpack.c.l.b16 %v667
          %v827 = vunpack.c.h.b16 %v667
          %v828 = vunpack.c.l.b16 %v668
          %v829 = vunpack.c.h.b16 %v668
          %v830 = vunpack.c.l.b16 %v669
          %v831 = vunpack.c.h.b16 %v669
          %v832 = vunpack.c.l.b16 %v670
          %v833 = vunpack.c.h.b16 %v670
          %v834 = vunpack.c.l.b16 %v671
          %v835 = vunpack.c.h.b16 %v671
          %v836 = vunpack.c.l.b16 %v672
          %v837 = vunpack.c.h.b16 %v672
          %v838 = vunpack.c.l.b16 %v673
          %v839 = vunpack.c.h.b16 %v673
          %v840 = vunpack.c.l.b16 %v674
          %v841 = vunpack.c.h.b16 %v674
          %v842 = vunpack.c.l.b16 %v675
          %v843 = vunpack.c.h.b16 %v675
          %v844 = vunpack.c.l.b16 %v676
          %v845 = vunpack.c.h.b16 %v676
          %v846 = vunpack.c.l.b16 %v677
          %v847 = vunpack.c.h.b16 %v677
          %v848 = vunpack.c.l.b16 %v678
          %v849 = vunpack.c.h.b16 %v678
          %v850 = vunpack.c.l.b16 %v679
          %v851 = vunpack.c.h.b16 %v679
          %v852 = vunpack.c.l.b16 %v680
          %v853 = vunpack.c.h.b16 %v680
          %v854 = vunpack.c.l.b16 %v681
          %v855 = vunpack.c.h.b16 %v681
          %v856 = vunpack.c.l.b16 %v682
          %v857 = vunpack.c.h.b16 %v682
          %v858 = vunpack.c.l.b16 %v683
          %v859 = vunpack.c.h.b16 %v683
          %v860 = vunpack.c.l.b16 %v684
          %v861 = vunpack.c.h.b16 %v684
          %v862 = vunpack.c.l.b16 %v685
          %v863 = vunpack.c.h.b16 %v685
          %v864 = vunpack.c.l.b16 %v686
          %v865 = vunpack.c.h.b16 %v686
          %v866 = vunpack.c.l.b16 %v687
          %v867 = vunpack.c.h.b16 %v687
          %v868 = vunpack.c.l.b16 %v688
          %v869 = vunpack.c.h.b16 %v688
          %v870 = vunpack.c.l.b16 %v689
          %v871 = vunpack.c.h.b16 %v689
          %v872 = vunpack.c.l.b16 %v690
          %v873 = vunpack.c.h.b16 %v690
          %v874 = vunpack.c.l.b16 %v691
          %v875 = vunpack.c.h.b16 %v691
          %v876 = vunpack.c.l.b16 %v692
          %v877 = vunpack.c.h.b16 %v692
          %v878 = vunpack.c.l.b16 %v693
          %v879 = vunpack.c.h.b16 %v693
          %v880 = vunpack.c.l.b16 %v694
          %v881 = vunpack.c.h.b16 %v694
          %v882 = vunpack.c.l.b16 %v695
          %v883 = vunpack.c.h.b16 %v695
          %v884 = vunpack.c.l.b16 %v696
          %v885 = vunpack.c.h.b16 %v696
          %v886 = vunpack.c.l.b16 %v697
          %v887 = vunpack.c.h.b16 %v697
          %v888 = vunpack.c.l.b16 %v698
          %v889 = vunpack.c.h.b16 %v698
          %v890 = vunpack.c.l.b16 %v699
          %v891 = vunpack.c.h.b16 %v699
          %v892 = vunpack.c.l.b16 %v700
          %v893 = vunpack.c.h.b16 %v700
          %v894 = vunpack.c.l.b16 %v701
          %v895 = vunpack.c.h.b16 %v701
          %v896 = vunpack.c.l.b16 %v702
          %v897 = vunpack.c.h.b16 %v702
          %v898 = vunpack.c.l.b16 %v703
          %v899 = vunpack.c.h.b16 %v703
          %v900 = vunpack.c.l.b16 %v704
          %v901 = vunpack.c.h.b16 %v704
          %v902 = vunpack.c.l.b16 %v705
          %v903 = vunpack.c.h.b16 %v705
          %v904 = vunpack.c.l.b16 %v706
          %v905 = vunpack.c.h.b16 %v706
          %v906 = vunpack.c.l.b16 %v707
          %v907 = vunpack.c.h.b16 %v707
          %v908 = vunpack.c.l.b16 %v708
          %v909 = vunpack.c.h.b16 %v708
          %v910 = vunpack.c.l.b16 %v709
          %v911 = vunpack.c.h.b16 %v709
          %v912 = vpack.c.b16 %v788, %v784
          %v913 = vpack.c.b16 %v789, %v785
          %v914 = vpack.c.b16 %v790, %v786
          %v915 = vpack.c.b16 %v791, %v787
          %v916 = vpack.c.b16 %v796, %v792
          %v917 = vpack.c.b16 %v797, %v793
          %v918 = vpack.c.b16 %v798, %v794
          %v919 = vpack.c.b16 %v799, %v795
          %v920 = vpack.c.b16 %v804, %v800
          %v921 = vpack.c.b16 %v805, %v801
          %v922 = vpack.c.b16 %v806, %v802
          %v923 = vpack.c.b16 %v807, %v803
          %v924 = vpack.c.b16 %v812, %v808
          %v925 = vpack.c.b16 %v813, %v809
          %v926 = vpack.c.b16 %v814, %v810
          %v927 = vpack.c.b16 %v815, %v811
          %v928 = vpack.c.b16 %v820, %v816
          %v929 = vpack.c.b16 %v821, %v817
          %v930 = vpack.c.b16 %v822, %v818
          %v931 = vpack.c.b16 %v823, %v819
          %v932 = vpack.c.b16 %v828, %v824
          %v933 = vpack.c.b16 %v829, %v825
          %v934 = vpack.c.b16 %v830, %v826
          %v935 = vpack.c.b16 %v831, %v827
          %v936 = vpack.c.b16 %v836, %v832
          %v937 = vpack.c.b16 %v837, %v833
          %v938 = vpack.c.b16 %v838, %v834
          %v939 = vpack.c.b16 %v839, %v835
          %v940 = vpack.c.b16 %v844, %v840
          %v941 = vpack.c.b16 %v845, %v841
          %v942 = vpack.c.b16 %v846, %v842
          %v943 = vpack.c.b16 %v847, %v843
          %v944 = vpack.c.b16 %v852, %v848
          %v945 = vpack.c.b16 %v853, %v849
          %v946 = vpack.c.b16 %v854, %v850
          %v947 = vpack.c.b16 %v855, %v851
          %v948 = vpack.c.b16 %v860, %v856
          %v949 = vpack.c.b16 %v861, %v857
          %v950 = vpack.c.b16 %v862, %v858
          %v951 = vpack.c.b16 %v863, %v859
          %v952 = vpack.c.b16 %v868, %v864
          %v953 = vpack.c.b16 %v869, %v865
          %v954 = vpack.c.b16 %v870, %v866
          %v955 = vpack.c.b16 %v871, %v867
          %v956 = vpack.c.b16 %v876, %v872
          %v957 = vpack.c.b16 %v877, %v873
          %v958 = vpack.c.b16 %v878, %v874
          %v959 = vpack.c.b16 %v879, %v875
          %v960 = vpack.c.b16 %v884, %v880
          %v961 = vpack.c.b16 %v885, %v881
          %v962 = vpack.c.b16 %v886, %v882
          %v963 = vpack.c.b16 %v887, %v883
          %v964 = vpack.c.b16 %v892, %v888
          %v965 = vpack.c.b16 %v893, %v889
          %v966 = vpack.c.b16 %v894, %v890
          %v967 = vpack.c.b16 %v895, %v891
          %v968 = vpack.c.b16 %v900, %v896
          %v969 = vpack.c.b16 %v901, %v897
          %v970 = vpack.c.b16 %v902, %v898
          %v971 = vpack.c.b16 %v903, %v899
          %v972 = vpack.c.b16 %v908, %v904
          %v973 = vpack.c.b16 %v909, %v905
          %v974 = vpack.c.b16 %v910, %v906
          %v975 = vpack.c.b16 %v911, %v907
          %1040 = vmatpush.bf16.msra.mxu0 %v940
          %1041 = vmatpush.bf16.msra.mxu0 %v936
          %1042 = vmatpush.bf16.msra.mxu0 %v932
          %1043 = vmatpush.bf16.msra.mxu0 %v928
          %1044 = vmatpush.bf16.msra.mxu0 %v924
          %1045 = vmatpush.bf16.msra.mxu0 %v920
          %1046 = vmatpush.bf16.msra.mxu0 %v916
          %1047 = vmatpush.bf16.msra.mxu0 %v912
          %1048 = vmatmul.bf16.gmra.mxu0 %v644
          %v1049 = vpop.f32.mrf.mxu0
          %v1050 = vadd.f32 %v712, %v1049
          %v1051 = vpop.f32.mrf.mxu0
          %1052 = vdwg.mxu0
          %1053 = vmatpush.bf16.msra.mxu0 %v972
          %1054 = vmatpush.bf16.msra.mxu0 %v968
          %1055 = vmatpush.bf16.msra.mxu0 %v964
          %1056 = vmatpush.bf16.msra.mxu0 %v960
          %1057 = vmatpush.bf16.msra.mxu0 %v956
          %1058 = vmatpush.bf16.msra.mxu0 %v952
          %1059 = vmatpush.bf16.msra.mxu0 %v948
          %1060 = vmatpush.bf16.msra.mxu0 %v944
          %1061 = vmatmul.bf16.gmra.mxu0 %v645
          %v1062 = vpop.f32.mrf.mxu0
          %v1063 = vadd.f32 %v1050, %v1062
          %v1064 = vpop.f32.mrf.mxu0
          %1065 = vdwg.mxu0
          %1066 = vmatpush.bf16.msra.mxu0 %v941
          %1067 = vmatpush.bf16.msra.mxu0 %v937
          %1068 = vmatpush.bf16.msra.mxu0 %v933
          %1069 = vmatpush.bf16.msra.mxu0 %v929
          %1070 = vmatpush.bf16.msra.mxu0 %v925
          %1071 = vmatpush.bf16.msra.mxu0 %v921
          %1072 = vmatpush.bf16.msra.mxu0 %v917
          %1073 = vmatpush.bf16.msra.mxu0 %v913
          %1074 = vmatmul.bf16.gmra.mxu0 %v644
          %v1075 = vpop.f32.mrf.mxu0
          %v1076 = vadd.f32 %v713, %v1075
          %v1077 = vpop.f32.mrf.mxu0
          %1078 = vdwg.mxu0
          %1079 = vmatpush.bf16.msra.mxu0 %v973
          %1080 = vmatpush.bf16.msra.mxu0 %v969
          %1081 = vmatpush.bf16.msra.mxu0 %v965
          %1082 = vmatpush.bf16.msra.mxu0 %v961
          %1083 = vmatpush.bf16.msra.mxu0 %v957
          %1084 = vmatpush.bf16.msra.mxu0 %v953
          %1085 = vmatpush.bf16.msra.mxu0 %v949
          %1086 = vmatpush.bf16.msra.mxu0 %v945
          %1087 = vmatmul.bf16.gmra.mxu0 %v645
          %v1088 = vpop.f32.mrf.mxu0
          %v1089 = vadd.f32 %v1076, %v1088
          %v1090 = vpop.f32.mrf.mxu0
          %1091 = vdwg.mxu0
          %1092 = vmatpush.bf16.msra.mxu0 %v942
          %1093 = vmatpush.bf16.msra.mxu0 %v938
          %1094 = vmatpush.bf16.msra.mxu0 %v934
          %1095 = vmatpush.bf16.msra.mxu0 %v930
          %1096 = vmatpush.bf16.msra.mxu0 %v926
          %1097 = vmatpush.bf16.msra.mxu0 %v922
          %1098 = vmatpush.bf16.msra.mxu0 %v918
          %1099 = vmatpush.bf16.msra.mxu0 %v914
          %1100 = vmatmul.bf16.gmra.mxu0 %v644
          %v1101 = vpop.f32.mrf.mxu0
          %v1102 = vadd.f32 %v714, %v1101
          %v1103 = vpop.f32.mrf.mxu0
          %1104 = vdwg.mxu0
          %1105 = vmatpush.bf16.msra.mxu0 %v974
          %1106 = vmatpush.bf16.msra.mxu0 %v970
          %1107 = vmatpush.bf16.msra.mxu0 %v966
          %1108 = vmatpush.bf16.msra.mxu0 %v962
          %1109 = vmatpush.bf16.msra.mxu0 %v958
          %1110 = vmatpush.bf16.msra.mxu0 %v954
          %1111 = vmatpush.bf16.msra.mxu0 %v950
          %1112 = vmatpush.bf16.msra.mxu0 %v946
          %1113 = vmatmul.bf16.gmra.mxu0 %v645
          %v1114 = vpop.f32.mrf.mxu0
          %v1115 = vadd.f32 %v1102, %v1114
          %v1116 = vpop.f32.mrf.mxu0
          %1117 = vdwg.mxu0
          %1118 = vmatpush.bf16.msra.mxu0 %v943
          %1119 = vmatpush.bf16.msra.mxu0 %v939
          %1120 = vmatpush.bf16.msra.mxu0 %v935
          %1121 = vmatpush.bf16.msra.mxu0 %v931
          %1122 = vmatpush.bf16.msra.mxu0 %v927
          %1123 = vmatpush.bf16.msra.mxu0 %v923
          %1124 = vmatpush.bf16.msra.mxu0 %v919
          %1125 = vmatpush.bf16.msra.mxu0 %v915
          %1126 = vmatmul.bf16.gmra.mxu0 %v644
          %v1127 = vpop.f32.mrf.mxu0
          %v1128 = vadd.f32 %v715, %v1127
          %v1129 = vpop.f32.mrf.mxu0
          %1130 = vdwg.mxu0
          %1131 = vmatpush.bf16.msra.mxu0 %v975
          %1132 = vmatpush.bf16.msra.mxu0 %v971
          %1133 = vmatpush.bf16.msra.mxu0 %v967
          %1134 = vmatpush.bf16.msra.mxu0 %v963
          %1135 = vmatpush.bf16.msra.mxu0 %v959
          %1136 = vmatpush.bf16.msra.mxu0 %v955
          %1137 = vmatpush.bf16.msra.mxu0 %v951
          %1138 = vmatpush.bf16.msra.mxu0 %v947
          %1139 = vmatmul.bf16.gmra.mxu0 %v645
          %v1140 = vpop.f32.mrf.mxu0
          %v1141 = vadd.f32 %v1128, %v1140
          %v1142 = vpop.f32.mrf.mxu0
          %1143 = vdwg.mxu0
          %v1144 = vmul.f32 %v1063, 0.2
          %v1145 = vmul.f32 %v1089, 0.2
          %v1146 = vmul.f32 %v1115, 0.2
          %v1147 = vmul.f32 %v1141, 0.2
          %v1148 = vmax.f32 %v1063, %v1144
          %v1149 = vmax.f32 %v1089, %v1145
          %v1150 = vmax.f32 %v1115, %v1146
          %v1151 = vmax.f32 %v1141, %v1147
          %v1152 = vpack.c.bf16 %v1149, %v1148
          %v1153 = vpack.c.bf16 %v1151, %v1150
          %1154 = vst [vmem:[#allocation2] sm:$0xff] %v1152
          %1155 = vst [vmem:[#allocation2 + $0x8] sm:$0xff] %v1153
          %v1156 = vld [vmem:[#allocation18] sm:$0xff]
          %v1158 = vperm.slane %v1156, 0
          %v1159 = vperm.slane %v1156, 1
          %v1160 = vperm.slane %v1156, 2
          %v1161 = vperm.slane %v1156, 3
          %v1162 = vperm.slane %v1156, 4
          %v1163 = vperm.slane %v1156, 5
          %v1164 = vperm.slane %v1156, 6
          %1172 = vst [vmem:[#allocation3] sm:$0xff] %v1158
          %1173 = vst [vmem:[#allocation3 + $0x8] sm:$0xff] %v1159
          %1174 = vst [vmem:[#allocation3 + $0x10] sm:$0xff] %v1160
          %1175 = vst [vmem:[#allocation3 + $0x18] sm:$0xff] %v1161
          %1176 = vst [vmem:[#allocation3 + $0x20] sm:$0xff] %v1162
          %1177 = vst [vmem:[#allocation3 + $0x28] sm:$0xff] %v1163
          %1178 = vst [vmem:[#allocation3 + $0x30] sm:$0xff] %v1164
        $region100: #{tpu_custom_call.1} parent=59 // pred_fallthru
          _
        %v1179 = vld [vmem:[#allocation2] sm:$0xff]
        %v1180 = vld [vmem:[#allocation2 + $0x8] sm:$0xff]
        %v1181 = vld [vmem:[%s472] sm:$0xff]
        %v1182 = vld [vmem:[%s472 + $0x8] sm:$0xff]
        %v1183 = vld [vmem:[%s472 + $0x10] sm:$0xff]
        %v1184 = vld [vmem:[%s472 + $0x18] sm:$0xff]
        %v1185 = vld [vmem:[%s472 + $0x20] sm:$0xff]
        %v1186 = vld [vmem:[%s472 + $0x28] sm:$0xff]
        %v1187 = vld [vmem:[%s472 + $0x30] sm:$0xff]
        %v1188 = vld [vmem:[%s472 + $0x38] sm:$0xff]
        %v1189 = vld [vmem:[%s472 + $0x40] sm:$0xff]
        %v1190 = vld [vmem:[%s472 + $0x48] sm:$0xff]
        %v1191 = vld [vmem:[%s472 + $0x50] sm:$0xff]
        %v1192 = vld [vmem:[%s472 + $0x58] sm:$0xff]
        %v1193 = vld [vmem:[%s472 + $0x60] sm:$0xff]
        %v1194 = vld [vmem:[%s472 + $0x68] sm:$0xff]
        %v1195 = vld [vmem:[%s472 + $0x70] sm:$0xff]
        %v1196 = vld [vmem:[%s472 + $0x78] sm:$0xff]
        %v1197 = vld [vmem:[%s472 + $0x80] sm:$0xff]
        %v1198 = vld [vmem:[%s472 + $0x88] sm:$0xff]
        %v1199 = vld [vmem:[%s472 + $0x90] sm:$0xff]
        %v1200 = vld [vmem:[%s472 + $0x98] sm:$0xff]
        %v1201 = vld [vmem:[%s472 + $0xa0] sm:$0xff]
        %v1202 = vld [vmem:[%s472 + $0xa8] sm:$0xff]
        %v1203 = vld [vmem:[%s472 + $0xb0] sm:$0xff]
        %v1204 = vld [vmem:[%s472 + $0xb8] sm:$0xff]
        %v1205 = vld [vmem:[%s472 + $0xc0] sm:$0xff]
        %v1206 = vld [vmem:[%s472 + $0xc8] sm:$0xff]
        %v1207 = vld [vmem:[%s472 + $0xd0] sm:$0xff]
        %v1208 = vld [vmem:[%s472 + $0xd8] sm:$0xff]
        %v1209 = vld [vmem:[%s472 + $0xe0] sm:$0xff]
        %v1210 = vld [vmem:[%s472 + $0xe8] sm:$0xff]
        %v1211 = vld [vmem:[%s472 + $0xf0] sm:$0xff]
        %v1212 = vld [vmem:[%s472 + $0xf8] sm:$0xff]
        %v1213 = vld [vmem:[%s472 + $0x100] sm:$0xff]
        %v1214 = vld [vmem:[%s472 + $0x108] sm:$0xff]
        %v1215 = vld [vmem:[%s472 + $0x110] sm:$0xff]
        %v1216 = vld [vmem:[%s472 + $0x118] sm:$0xff]
        %v1217 = vld [vmem:[%s472 + $0x120] sm:$0xff]
        %v1218 = vld [vmem:[%s472 + $0x128] sm:$0xff]
        %v1219 = vld [vmem:[%s472 + $0x130] sm:$0xff]
        %v1220 = vld [vmem:[%s472 + $0x138] sm:$0xff]
        %v1221 = vld [vmem:[%s472 + $0x140] sm:$0xff]
        %v1222 = vld [vmem:[%s472 + $0x148] sm:$0xff]
        %v1223 = vld [vmem:[%s472 + $0x150] sm:$0xff]
        %v1224 = vld [vmem:[%s472 + $0x158] sm:$0xff]
        %v1225 = vld [vmem:[%s472 + $0x160] sm:$0xff]
        %v1226 = vld [vmem:[%s472 + $0x168] sm:$0xff]
        %v1227 = vld [vmem:[%s472 + $0x170] sm:$0xff]
        %v1228 = vld [vmem:[%s472 + $0x178] sm:$0xff]
        %v1229 = vld [vmem:[%s472 + $0x180] sm:$0xff]
        %v1230 = vld [vmem:[%s472 + $0x188] sm:$0xff]
        %v1231 = vld [vmem:[%s472 + $0x190] sm:$0xff]
        %v1232 = vld [vmem:[%s472 + $0x198] sm:$0xff]
        %v1233 = vld [vmem:[%s472 + $0x1a0] sm:$0xff]
        %v1234 = vld [vmem:[%s472 + $0x1a8] sm:$0xff]
        %v1235 = vld [vmem:[%s472 + $0x1b0] sm:$0xff]
        %v1236 = vld [vmem:[%s472 + $0x1b8] sm:$0xff]
        %v1237 = vld [vmem:[%s472 + $0x1c0] sm:$0xff]
        %v1238 = vld [vmem:[%s472 + $0x1c8] sm:$0xff]
        %v1239 = vld [vmem:[%s472 + $0x1d0] sm:$0xff]
        %v1240 = vld [vmem:[%s472 + $0x1d8] sm:$0xff]
        %v1241 = vld [vmem:[%s472 + $0x1e0] sm:$0xff]
        %v1242 = vld [vmem:[%s472 + $0x1e8] sm:$0xff]
        %v1243 = vld [vmem:[%s472 + $0x1f0] sm:$0xff]
        %v1244 = vld [vmem:[%s472 + $0x1f8] sm:$0xff]
        %v1245 = vld [vmem:[%s482] sm:$0x3]
        %v1247 = vperm.slane %v1245, 0
        %v1248 = vperm.slane %v1245, 1
        %v1253 = vunpack.c.l.b16 %v1179
        %v1254 = vunpack.c.h.b16 %v1179
        %v1255 = vunpack.c.l.b16 %v1180
        %v1256 = vunpack.c.h.b16 %v1180
        %v1257 = vpack.c.b16 %v1253, %v1253
        %v1258 = vpack.c.b16 %v1254, %v1254
        %v1259 = vpack.c.b16 %v1255, %v1255
        %v1260 = vpack.c.b16 %v1256, %v1256
        %v1329 = vunpack.c.l.b16 %v1181
        %v1330 = vunpack.c.h.b16 %v1181
        %v1331 = vunpack.c.l.b16 %v1182
        %v1332 = vunpack.c.h.b16 %v1182
        %v1333 = vunpack.c.l.b16 %v1183
        %v1334 = vunpack.c.h.b16 %v1183
        %v1335 = vunpack.c.l.b16 %v1184
        %v1336 = vunpack.c.h.b16 %v1184
        %v1337 = vunpack.c.l.b16 %v1185
        %v1338 = vunpack.c.h.b16 %v1185
        %v1339 = vunpack.c.l.b16 %v1186
        %v1340 = vunpack.c.h.b16 %v1186
        %v1341 = vunpack.c.l.b16 %v1187
        %v1342 = vunpack.c.h.b16 %v1187
        %v1343 = vunpack.c.l.b16 %v1188
        %v1344 = vunpack.c.h.b16 %v1188
        %v1345 = vunpack.c.l.b16 %v1189
        %v1346 = vunpack.c.h.b16 %v1189
        %v1347 = vunpack.c.l.b16 %v1190
        %v1348 = vunpack.c.h.b16 %v1190
        %v1349 = vunpack.c.l.b16 %v1191
        %v1350 = vunpack.c.h.b16 %v1191
        %v1351 = vunpack.c.l.b16 %v1192
        %v1352 = vunpack.c.h.b16 %v1192
        %v1353 = vunpack.c.l.b16 %v1193
        %v1354 = vunpack.c.h.b16 %v1193
        %v1355 = vunpack.c.l.b16 %v1194
        %v1356 = vunpack.c.h.b16 %v1194
        %v1357 = vunpack.c.l.b16 %v1195
        %v1358 = vunpack.c.h.b16 %v1195
        %v1359 = vunpack.c.l.b16 %v1196
        %v1360 = vunpack.c.h.b16 %v1196
        %v1361 = vunpack.c.l.b16 %v1197
        %v1362 = vunpack.c.h.b16 %v1197
        %v1363 = vunpack.c.l.b16 %v1198
        %v1364 = vunpack.c.h.b16 %v1198
        %v1365 = vunpack.c.l.b16 %v1199
        %v1366 = vunpack.c.h.b16 %v1199
        %v1367 = vunpack.c.l.b16 %v1200
        %v1368 = vunpack.c.h.b16 %v1200
        %v1369 = vunpack.c.l.b16 %v1201
        %v1370 = vunpack.c.h.b16 %v1201
        %v1371 = vunpack.c.l.b16 %v1202
        %v1372 = vunpack.c.h.b16 %v1202
        %v1373 = vunpack.c.l.b16 %v1203
        %v1374 = vunpack.c.h.b16 %v1203
        %v1375 = vunpack.c.l.b16 %v1204
        %v1376 = vunpack.c.h.b16 %v1204
        %v1377 = vunpack.c.l.b16 %v1205
        %v1378 = vunpack.c.h.b16 %v1205
        %v1379 = vunpack.c.l.b16 %v1206
        %v1380 = vunpack.c.h.b16 %v1206
        %v1381 = vunpack.c.l.b16 %v1207
        %v1382 = vunpack.c.h.b16 %v1207
        %v1383 = vunpack.c.l.b16 %v1208
        %v1384 = vunpack.c.h.b16 %v1208
        %v1385 = vunpack.c.l.b16 %v1209
        %v1386 = vunpack.c.h.b16 %v1209
        %v1387 = vunpack.c.l.b16 %v1210
        %v1388 = vunpack.c.h.b16 %v1210
        %v1389 = vunpack.c.l.b16 %v1211
        %v1390 = vunpack.c.h.b16 %v1211
        %v1391 = vunpack.c.l.b16 %v1212
        %v1392 = vunpack.c.h.b16 %v1212
        %v1393 = vunpack.c.l.b16 %v1213
        %v1394 = vunpack.c.h.b16 %v1213
        %v1395 = vunpack.c.l.b16 %v1214
        %v1396 = vunpack.c.h.b16 %v1214
        %v1397 = vunpack.c.l.b16 %v1215
        %v1398 = vunpack.c.h.b16 %v1215
        %v1399 = vunpack.c.l.b16 %v1216
        %v1400 = vunpack.c.h.b16 %v1216
        %v1401 = vunpack.c.l.b16 %v1217
        %v1402 = vunpack.c.h.b16 %v1217
        %v1403 = vunpack.c.l.b16 %v1218
        %v1404 = vunpack.c.h.b16 %v1218
        %v1405 = vunpack.c.l.b16 %v1219
        %v1406 = vunpack.c.h.b16 %v1219
        %v1407 = vunpack.c.l.b16 %v1220
        %v1408 = vunpack.c.h.b16 %v1220
        %v1409 = vunpack.c.l.b16 %v1221
        %v1410 = vunpack.c.h.b16 %v1221
        %v1411 = vunpack.c.l.b16 %v1222
        %v1412 = vunpack.c.h.b16 %v1222
        %v1413 = vunpack.c.l.b16 %v1223
        %v1414 = vunpack.c.h.b16 %v1223
        %v1415 = vunpack.c.l.b16 %v1224
        %v1416 = vunpack.c.h.b16 %v1224
        %v1417 = vunpack.c.l.b16 %v1225
        %v1418 = vunpack.c.h.b16 %v1225
        %v1419 = vunpack.c.l.b16 %v1226
        %v1420 = vunpack.c.h.b16 %v1226
        %v1421 = vunpack.c.l.b16 %v1227
        %v1422 = vunpack.c.h.b16 %v1227
        %v1423 = vunpack.c.l.b16 %v1228
        %v1424 = vunpack.c.h.b16 %v1228
        %v1425 = vunpack.c.l.b16 %v1229
        %v1426 = vunpack.c.h.b16 %v1229
        %v1427 = vunpack.c.l.b16 %v1230
        %v1428 = vunpack.c.h.b16 %v1230
        %v1429 = vunpack.c.l.b16 %v1231
        %v1430 = vunpack.c.h.b16 %v1231
        %v1431 = vunpack.c.l.b16 %v1232
        %v1432 = vunpack.c.h.b16 %v1232
        %v1433 = vunpack.c.l.b16 %v1233
        %v1434 = vunpack.c.h.b16 %v1233
        %v1435 = vunpack.c.l.b16 %v1234
        %v1436 = vunpack.c.h.b16 %v1234
        %v1437 = vunpack.c.l.b16 %v1235
        %v1438 = vunpack.c.h.b16 %v1235
        %v1439 = vunpack.c.l.b16 %v1236
        %v1440 = vunpack.c.h.b16 %v1236
        %v1441 = vunpack.c.l.b16 %v1237
        %v1442 = vunpack.c.h.b16 %v1237
        %v1443 = vunpack.c.l.b16 %v1238
        %v1444 = vunpack.c.h.b16 %v1238
        %v1445 = vunpack.c.l.b16 %v1239
        %v1446 = vunpack.c.h.b16 %v1239
        %v1447 = vunpack.c.l.b16 %v1240
        %v1448 = vunpack.c.h.b16 %v1240
        %v1449 = vunpack.c.l.b16 %v1241
        %v1450 = vunpack.c.h.b16 %v1241
        %v1451 = vunpack.c.l.b16 %v1242
        %v1452 = vunpack.c.h.b16 %v1242
        %v1453 = vunpack.c.l.b16 %v1243
        %v1454 = vunpack.c.h.b16 %v1243
        %v1455 = vunpack.c.l.b16 %v1244
        %v1456 = vunpack.c.h.b16 %v1244
        %v1457 = vpack.c.b16 %v1331, %v1329
        %v1458 = vpack.c.b16 %v1332, %v1330
        %v1459 = vpack.c.b16 %v1335, %v1333
        %v1460 = vpack.c.b16 %v1336, %v1334
        %v1461 = vpack.c.b16 %v1339, %v1337
        %v1462 = vpack.c.b16 %v1340, %v1338
        %v1463 = vpack.c.b16 %v1343, %v1341
        %v1464 = vpack.c.b16 %v1344, %v1342
        %v1465 = vpack.c.b16 %v1347, %v1345
        %v1466 = vpack.c.b16 %v1348, %v1346
        %v1467 = vpack.c.b16 %v1351, %v1349
        %v1468 = vpack.c.b16 %v1352, %v1350
        %v1469 = vpack.c.b16 %v1355, %v1353
        %v1470 = vpack.c.b16 %v1356, %v1354
        %v1471 = vpack.c.b16 %v1359, %v1357
        %v1472 = vpack.c.b16 %v1360, %v1358
        %v1473 = vpack.c.b16 %v1363, %v1361
        %v1474 = vpack.c.b16 %v1364, %v1362
        %v1475 = vpack.c.b16 %v1367, %v1365
        %v1476 = vpack.c.b16 %v1368, %v1366
        %v1477 = vpack.c.b16 %v1371, %v1369
        %v1478 = vpack.c.b16 %v1372, %v1370
        %v1479 = vpack.c.b16 %v1375, %v1373
        %v1480 = vpack.c.b16 %v1376, %v1374
        %v1481 = vpack.c.b16 %v1379, %v1377
        %v1482 = vpack.c.b16 %v1380, %v1378
        %v1483 = vpack.c.b16 %v1383, %v1381
        %v1484 = vpack.c.b16 %v1384, %v1382
        %v1485 = vpack.c.b16 %v1387, %v1385
        %v1486 = vpack.c.b16 %v1388, %v1386
        %v1487 = vpack.c.b16 %v1391, %v1389
        %v1488 = vpack.c.b16 %v1392, %v1390
        %v1489 = vpack.c.b16 %v1395, %v1393
        %v1490 = vpack.c.b16 %v1396, %v1394
        %v1491 = vpack.c.b16 %v1399, %v1397
        %v1492 = vpack.c.b16 %v1400, %v1398
        %v1493 = vpack.c.b16 %v1403, %v1401
        %v1494 = vpack.c.b16 %v1404, %v1402
        %v1495 = vpack.c.b16 %v1407, %v1405
        %v1496 = vpack.c.b16 %v1408, %v1406
        %v1497 = vpack.c.b16 %v1411, %v1409
        %v1498 = vpack.c.b16 %v1412, %v1410
        %v1499 = vpack.c.b16 %v1415, %v1413
        %v1500 = vpack.c.b16 %v1416, %v1414
        %v1501 = vpack.c.b16 %v1419, %v1417
        %v1502 = vpack.c.b16 %v1420, %v1418
        %v1503 = vpack.c.b16 %v1423, %v1421
        %v1504 = vpack.c.b16 %v1424, %v1422
        %v1505 = vpack.c.b16 %v1427, %v1425
        %v1506 = vpack.c.b16 %v1428, %v1426
        %v1507 = vpack.c.b16 %v1431, %v1429
        %v1508 = vpack.c.b16 %v1432, %v1430
        %v1509 = vpack.c.b16 %v1435, %v1433
        %v1510 = vpack.c.b16 %v1436, %v1434
        %v1511 = vpack.c.b16 %v1439, %v1437
        %v1512 = vpack.c.b16 %v1440, %v1438
        %v1513 = vpack.c.b16 %v1443, %v1441
        %v1514 = vpack.c.b16 %v1444, %v1442
        %v1515 = vpack.c.b16 %v1447, %v1445
        %v1516 = vpack.c.b16 %v1448, %v1446
        %v1517 = vpack.c.b16 %v1451, %v1449
        %v1518 = vpack.c.b16 %v1452, %v1450
        %v1519 = vpack.c.b16 %v1455, %v1453
        %v1520 = vpack.c.b16 %v1456, %v1454
        %1585 = vmatpush.bf16.msra.mxu0 %v1471
        %1586 = vmatpush.bf16.msra.mxu0 %v1469
        %1587 = vmatpush.bf16.msra.mxu0 %v1467
        %1588 = vmatpush.bf16.msra.mxu0 %v1465
        %1589 = vmatpush.bf16.msra.mxu0 %v1463
        %1590 = vmatpush.bf16.msra.mxu0 %v1461
        %1591 = vmatpush.bf16.msra.mxu0 %v1459
        %1592 = vmatpush.bf16.msra.mxu0 %v1457
        %1593 = vmatmul.bf16.gmra.mxu0 %v1257
        %v1594 = vpop.f32.mrf.mxu0
        %v1595 = vadd.f32 %v1247, %v1594
        %v1596 = vpop.f32.mrf.mxu0
        %1597 = vdwg.mxu0
        %1598 = vmatpush.bf16.msra.mxu0 %v1487
        %1599 = vmatpush.bf16.msra.mxu0 %v1485
        %1600 = vmatpush.bf16.msra.mxu0 %v1483
        %1601 = vmatpush.bf16.msra.mxu0 %v1481
        %1602 = vmatpush.bf16.msra.mxu0 %v1479
        %1603 = vmatpush.bf16.msra.mxu0 %v1477
        %1604 = vmatpush.bf16.msra.mxu0 %v1475
        %1605 = vmatpush.bf16.msra.mxu0 %v1473
        %1606 = vmatmul.bf16.gmra.mxu0 %v1258
        %v1607 = vpop.f32.mrf.mxu0
        %v1608 = vadd.f32 %v1595, %v1607
        %v1609 = vpop.f32.mrf.mxu0
        %1610 = vdwg.mxu0
        %1611 = vmatpush.bf16.msra.mxu0 %v1503
        %1612 = vmatpush.bf16.msra.mxu0 %v1501
        %1613 = vmatpush.bf16.msra.mxu0 %v1499
        %1614 = vmatpush.bf16.msra.mxu0 %v1497
        %1615 = vmatpush.bf16.msra.mxu0 %v1495
        %1616 = vmatpush.bf16.msra.mxu0 %v1493
        %1617 = vmatpush.bf16.msra.mxu0 %v1491
        %1618 = vmatpush.bf16.msra.mxu0 %v1489
        %1619 = vmatmul.bf16.gmra.mxu0 %v1259
        %v1620 = vpop.f32.mrf.mxu0
        %v1621 = vadd.f32 %v1608, %v1620
        %v1622 = vpop.f32.mrf.mxu0
        %1623 = vdwg.mxu0
        %1624 = vmatpush.bf16.msra.mxu0 %v1519
        %1625 = vmatpush.bf16.msra.mxu0 %v1517
        %1626 = vmatpush.bf16.msra.mxu0 %v1515
        %1627 = vmatpush.bf16.msra.mxu0 %v1513
        %1628 = vmatpush.bf16.msra.mxu0 %v1511
        %1629 = vmatpush.bf16.msra.mxu0 %v1509
        %1630 = vmatpush.bf16.msra.mxu0 %v1507
        %1631 = vmatpush.bf16.msra.mxu0 %v1505
        %1632 = vmatmul.bf16.gmra.mxu0 %v1260
        %v1633 = vpop.f32.mrf.mxu0
        %v1634 = vadd.f32 %v1621, %v1633
        %v1635 = vpop.f32.mrf.mxu0
        %1636 = vdwg.mxu0
        %1637 = vmatpush.bf16.msra.mxu0 %v1472
        %1638 = vmatpush.bf16.msra.mxu0 %v1470
        %1639 = vmatpush.bf16.msra.mxu0 %v1468
        %1640 = vmatpush.bf16.msra.mxu0 %v1466
        %1641 = vmatpush.bf16.msra.mxu0 %v1464
        %1642 = vmatpush.bf16.msra.mxu0 %v1462
        %1643 = vmatpush.bf16.msra.mxu0 %v1460
        %1644 = vmatpush.bf16.msra.mxu0 %v1458
        %1645 = vmatmul.bf16.gmra.mxu0 %v1257
        %v1646 = vpop.f32.mrf.mxu0
        %v1647 = vadd.f32 %v1248, %v1646
        %v1648 = vpop.f32.mrf.mxu0
        %1649 = vdwg.mxu0
        %1650 = vmatpush.bf16.msra.mxu0 %v1488
        %1651 = vmatpush.bf16.msra.mxu0 %v1486
        %1652 = vmatpush.bf16.msra.mxu0 %v1484
        %1653 = vmatpush.bf16.msra.mxu0 %v1482
        %1654 = vmatpush.bf16.msra.mxu0 %v1480
        %1655 = vmatpush.bf16.msra.mxu0 %v1478
        %1656 = vmatpush.bf16.msra.mxu0 %v1476
        %1657 = vmatpush.bf16.msra.mxu0 %v1474
        %1658 = vmatmul.bf16.gmra.mxu0 %v1258
        %v1659 = vpop.f32.mrf.mxu0
        %v1660 = vadd.f32 %v1647, %v1659
        %v1661 = vpop.f32.mrf.mxu0
        %1662 = vdwg.mxu0
        %1663 = vmatpush.bf16.msra.mxu0 %v1504
        %1664 = vmatpush.bf16.msra.mxu0 %v1502
        %1665 = vmatpush.bf16.msra.mxu0 %v1500
        %1666 = vmatpush.bf16.msra.mxu0 %v1498
        %1667 = vmatpush.bf16.msra.mxu0 %v1496
        %1668 = vmatpush.bf16.msra.mxu0 %v1494
        %1669 = vmatpush.bf16.msra.mxu0 %v1492
        %1670 = vmatpush.bf16.msra.mxu0 %v1490
        %1671 = vmatmul.bf16.gmra.mxu0 %v1259
        %v1672 = vpop.f32.mrf.mxu0
        %v1673 = vadd.f32 %v1660, %v1672
        %v1674 = vpop.f32.mrf.mxu0
        %1675 = vdwg.mxu0
        %1676 = vmatpush.bf16.msra.mxu0 %v1520
        %1677 = vmatpush.bf16.msra.mxu0 %v1518
        %1678 = vmatpush.bf16.msra.mxu0 %v1516
        %1679 = vmatpush.bf16.msra.mxu0 %v1514
        %1680 = vmatpush.bf16.msra.mxu0 %v1512
        %1681 = vmatpush.bf16.msra.mxu0 %v1510
        %1682 = vmatpush.bf16.msra.mxu0 %v1508
        %1683 = vmatpush.bf16.msra.mxu0 %v1506
        %1684 = vmatmul.bf16.gmra.mxu0 %v1260
        %v1685 = vpop.f32.mrf.mxu0
        %v1686 = vadd.f32 %v1673, %v1685
        %v1687 = vpop.f32.mrf.mxu0
        %1688 = vdwg.mxu0
        %v1689 = vmul.f32 %v1634, 0.2
        %v1690 = vmul.f32 %v1686, 0.2
        %v1691 = vmax.f32 %v1634, %v1689
        %v1692 = vmax.f32 %v1686, %v1690
        %v1693 = vld [vmem:[#allocation3] sm:$0xff]
        %v1694 = vld [vmem:[#allocation3 + $0x8] sm:$0xff]
        %v1695 = vld [vmem:[#allocation3 + $0x10] sm:$0xff]
        %v1696 = vld [vmem:[#allocation3 + $0x18] sm:$0xff]
        %v1697 = vld [vmem:[#allocation3 + $0x20] sm:$0xff]
        %v1698 = vld [vmem:[#allocation3 + $0x28] sm:$0xff]
        %v1699 = vld [vmem:[#allocation3 + $0x30] sm:$0xff]
        %v1700 = vpack.c.bf16 %v1691, %v1691
        %v1701 = vpack.c.bf16 %v1692, %v1692
        %v1702 = vld [vmem:[%s492] sm:$0xff]
        %v1703 = vld [vmem:[%s492 + $0x8] sm:$0xff]
        %v1704 = vld [vmem:[%s492 + $0x10] sm:$0xff]
        %v1705 = vld [vmem:[%s492 + $0x18] sm:$0xf]
        %v1706 = vld [vmem:[%s492 + $0x1c] sm:$0xff]
        %v1707 = vld [vmem:[%s492 + $0x24] sm:$0xff]
        %v1708 = vld [vmem:[%s492 + $0x2c] sm:$0xff]
        %v1709 = vld [vmem:[%s492 + $0x34] sm:$0xf]
        %v1710 = vld [vmem:[%s492 + $0x38] sm:$0xff]
        %v1711 = vld [vmem:[%s492 + $0x40] sm:$0xff]
        %v1712 = vld [vmem:[%s492 + $0x48] sm:$0xff]
        %v1713 = vld [vmem:[%s492 + $0x50] sm:$0xf]
        %v1714 = vld [vmem:[%s492 + $0x54] sm:$0xff]
        %v1715 = vld [vmem:[%s492 + $0x5c] sm:$0xff]
        %v1716 = vld [vmem:[%s492 + $0x64] sm:$0xff]
        %v1717 = vld [vmem:[%s492 + $0x6c] sm:$0xf]
        %v1718 = vld [vmem:[%s492 + $0x70] sm:$0xff]
        %v1719 = vld [vmem:[%s492 + $0x78] sm:$0xff]
        %v1720 = vld [vmem:[%s492 + $0x80] sm:$0xff]
        %v1721 = vld [vmem:[%s492 + $0x88] sm:$0xf]
        %v1722 = vld [vmem:[%s492 + $0x8c] sm:$0xff]
        %v1723 = vld [vmem:[%s492 + $0x94] sm:$0xff]
        %v1724 = vld [vmem:[%s492 + $0x9c] sm:$0xff]
        %v1725 = vld [vmem:[%s492 + $0xa4] sm:$0xf]
        %v1726 = vld [vmem:[%s492 + $0xa8] sm:$0xff]
        %v1727 = vld [vmem:[%s492 + $0xb0] sm:$0xff]
        %v1728 = vld [vmem:[%s492 + $0xb8] sm:$0xff]
        %v1729 = vld [vmem:[%s492 + $0xc0] sm:$0xf]
        %v1730 = vld [vmem:[%s492 + $0xc4] sm:$0xff]
        %v1731 = vld [vmem:[%s492 + $0xcc] sm:$0xff]
        %v1732 = vld [vmem:[%s492 + $0xd4] sm:$0xff]
        %v1733 = vld [vmem:[%s492 + $0xdc] sm:$0xf]
        %v1734 = vld [vmem:[%s492 + $0xe0] sm:$0xff]
        %v1735 = vld [vmem:[%s492 + $0xe8] sm:$0xff]
        %v1736 = vld [vmem:[%s492 + $0xf0] sm:$0xff]
        %v1737 = vld [vmem:[%s492 + $0xf8] sm:$0xf]
        %v1738 = vld [vmem:[%s492 + $0xfc] sm:$0xff]
        %v1739 = vld [vmem:[%s492 + $0x104] sm:$0xff]
        %v1740 = vld [vmem:[%s492 + $0x10c] sm:$0xff]
        %v1741 = vld [vmem:[%s492 + $0x114] sm:$0xf]
        %v1742 = vld [vmem:[%s492 + $0x118] sm:$0xff]
        %v1743 = vld [vmem:[%s492 + $0x120] sm:$0xff]
        %v1744 = vld [vmem:[%s492 + $0x128] sm:$0xff]
        %v1745 = vld [vmem:[%s492 + $0x130] sm:$0xf]
        %v1746 = vld [vmem:[%s492 + $0x134] sm:$0xff]
        %v1747 = vld [vmem:[%s492 + $0x13c] sm:$0xff]
        %v1748 = vld [vmem:[%s492 + $0x144] sm:$0xff]
        %v1749 = vld [vmem:[%s492 + $0x14c] sm:$0xf]
        %v1750 = vld [vmem:[%s492 + $0x150] sm:$0xff]
        %v1751 = vld [vmem:[%s492 + $0x158] sm:$0xff]
        %v1752 = vld [vmem:[%s492 + $0x160] sm:$0xff]
        %v1753 = vld [vmem:[%s492 + $0x168] sm:$0xf]
        %v1754 = vld [vmem:[%s492 + $0x16c] sm:$0xff]
        %v1755 = vld [vmem:[%s492 + $0x174] sm:$0xff]
        %v1756 = vld [vmem:[%s492 + $0x17c] sm:$0xff]
        %v1757 = vld [vmem:[%s492 + $0x184] sm:$0xf]
        %v1758 = vld [vmem:[%s492 + $0x188] sm:$0xff]
        %v1759 = vld [vmem:[%s492 + $0x190] sm:$0xff]
        %v1760 = vld [vmem:[%s492 + $0x198] sm:$0xff]
        %v1761 = vld [vmem:[%s492 + $0x1a0] sm:$0xf]
        %v1762 = vld [vmem:[%s492 + $0x1a4] sm:$0xff]
        %v1763 = vld [vmem:[%s492 + $0x1ac] sm:$0xff]
        %v1764 = vld [vmem:[%s492 + $0x1b4] sm:$0xff]
        %v1765 = vld [vmem:[%s492 + $0x1bc] sm:$0xf]
        %v1766 = vld [vmem:[%s492 + $0x1c0] sm:$0xff]
        %v1767 = vld [vmem:[%s492 + $0x1c8] sm:$0xff]
        %v1768 = vld [vmem:[%s492 + $0x1d0] sm:$0xff]
        %v1769 = vld [vmem:[%s492 + $0x1d8] sm:$0xf]
        %v1770 = vld [vmem:[%s492 + $0x1dc] sm:$0xff]
        %v1771 = vld [vmem:[%s492 + $0x1e4] sm:$0xff]
        %v1772 = vld [vmem:[%s492 + $0x1ec] sm:$0xff]
        %v1773 = vld [vmem:[%s492 + $0x1f4] sm:$0xf]
        %v1774 = vld [vmem:[%s492 + $0x1f8] sm:$0xff]
        %v1775 = vld [vmem:[%s492 + $0x200] sm:$0xff]
        %v1776 = vld [vmem:[%s492 + $0x208] sm:$0xff]
        %v1777 = vld [vmem:[%s492 + $0x210] sm:$0xf]
        %v1778 = vld [vmem:[%s492 + $0x214] sm:$0xff]
        %v1779 = vld [vmem:[%s492 + $0x21c] sm:$0xff]
        %v1780 = vld [vmem:[%s492 + $0x224] sm:$0xff]
        %v1781 = vld [vmem:[%s492 + $0x22c] sm:$0xf]
        %v1782 = vld [vmem:[%s492 + $0x230] sm:$0xff]
        %v1783 = vld [vmem:[%s492 + $0x238] sm:$0xff]
        %v1784 = vld [vmem:[%s492 + $0x240] sm:$0xff]
        %v1785 = vld [vmem:[%s492 + $0x248] sm:$0xf]
        %v1786 = vld [vmem:[%s492 + $0x24c] sm:$0xff]
        %v1787 = vld [vmem:[%s492 + $0x254] sm:$0xff]
        %v1788 = vld [vmem:[%s492 + $0x25c] sm:$0xff]
        %v1789 = vld [vmem:[%s492 + $0x264] sm:$0xf]
        %v1790 = vld [vmem:[%s492 + $0x268] sm:$0xff]
        %v1791 = vld [vmem:[%s492 + $0x270] sm:$0xff]
        %v1792 = vld [vmem:[%s492 + $0x278] sm:$0xff]
        %v1793 = vld [vmem:[%s492 + $0x280] sm:$0xf]
        %v1794 = vld [vmem:[%s492 + $0x284] sm:$0xff]
        %v1795 = vld [vmem:[%s492 + $0x28c] sm:$0xff]
        %v1796 = vld [vmem:[%s492 + $0x294] sm:$0xff]
        %v1797 = vld [vmem:[%s492 + $0x29c] sm:$0xf]
        %v1798 = vld [vmem:[%s492 + $0x2a0] sm:$0xff]
        %v1799 = vld [vmem:[%s492 + $0x2a8] sm:$0xff]
        %v1800 = vld [vmem:[%s492 + $0x2b0] sm:$0xff]
        %v1801 = vld [vmem:[%s492 + $0x2b8] sm:$0xf]
        %v1802 = vld [vmem:[%s492 + $0x2bc] sm:$0xff]
        %v1803 = vld [vmem:[%s492 + $0x2c4] sm:$0xff]
        %v1804 = vld [vmem:[%s492 + $0x2cc] sm:$0xff]
        %v1805 = vld [vmem:[%s492 + $0x2d4] sm:$0xf]
        %v1806 = vld [vmem:[%s492 + $0x2d8] sm:$0xff]
        %v1807 = vld [vmem:[%s492 + $0x2e0] sm:$0xff]
        %v1808 = vld [vmem:[%s492 + $0x2e8] sm:$0xff]
        %v1809 = vld [vmem:[%s492 + $0x2f0] sm:$0xf]
        %v1810 = vld [vmem:[%s492 + $0x2f4] sm:$0xff]
        %v1811 = vld [vmem:[%s492 + $0x2fc] sm:$0xff]
        %v1812 = vld [vmem:[%s492 + $0x304] sm:$0xff]
        %v1813 = vld [vmem:[%s492 + $0x30c] sm:$0xf]
        %v1814 = vld [vmem:[%s492 + $0x310] sm:$0xff]
        %v1815 = vld [vmem:[%s492 + $0x318] sm:$0xff]
        %v1816 = vld [vmem:[%s492 + $0x320] sm:$0xff]
        %v1817 = vld [vmem:[%s492 + $0x328] sm:$0xf]
        %v1818 = vld [vmem:[%s492 + $0x32c] sm:$0xff]
        %v1819 = vld [vmem:[%s492 + $0x334] sm:$0xff]
        %v1820 = vld [vmem:[%s492 + $0x33c] sm:$0xff]
        %v1821 = vld [vmem:[%s492 + $0x344] sm:$0xf]
        %v1822 = vld [vmem:[%s492 + $0x348] sm:$0xff]
        %v1823 = vld [vmem:[%s492 + $0x350] sm:$0xff]
        %v1824 = vld [vmem:[%s492 + $0x358] sm:$0xff]
        %v1825 = vld [vmem:[%s492 + $0x360] sm:$0xf]
        %v1826 = vld [vmem:[%s492 + $0x364] sm:$0xff]
        %v1827 = vld [vmem:[%s492 + $0x36c] sm:$0xff]
        %v1828 = vld [vmem:[%s492 + $0x374] sm:$0xff]
        %v1829 = vld [vmem:[%s492 + $0x37c] sm:$0xf]
        %v1958 = vunpack.c.l.b16 %v1702
        %v1959 = vunpack.c.h.b16 %v1702
        %v1960 = vunpack.c.l.b16 %v1703
        %v1961 = vunpack.c.h.b16 %v1703
        %v1962 = vunpack.c.l.b16 %v1704
        %v1963 = vunpack.c.h.b16 %v1704
        %v1964 = vunpack.c.l.b16 %v1705
        %v1965 = vunpack.c.l.b16 %v1706
        %v1966 = vunpack.c.h.b16 %v1706
        %v1967 = vunpack.c.l.b16 %v1707
        %v1968 = vunpack.c.h.b16 %v1707
        %v1969 = vunpack.c.l.b16 %v1708
        %v1970 = vunpack.c.h.b16 %v1708
        %v1971 = vunpack.c.l.b16 %v1709
        %v1972 = vunpack.c.l.b16 %v1710
        %v1973 = vunpack.c.h.b16 %v1710
        %v1974 = vunpack.c.l.b16 %v1711
        %v1975 = vunpack.c.h.b16 %v1711
        %v1976 = vunpack.c.l.b16 %v1712
        %v1977 = vunpack.c.h.b16 %v1712
        %v1978 = vunpack.c.l.b16 %v1713
        %v1979 = vunpack.c.l.b16 %v1714
        %v1980 = vunpack.c.h.b16 %v1714
        %v1981 = vunpack.c.l.b16 %v1715
        %v1982 = vunpack.c.h.b16 %v1715
        %v1983 = vunpack.c.l.b16 %v1716
        %v1984 = vunpack.c.h.b16 %v1716
        %v1985 = vunpack.c.l.b16 %v1717
        %v1986 = vunpack.c.l.b16 %v1718
        %v1987 = vunpack.c.h.b16 %v1718
        %v1988 = vunpack.c.l.b16 %v1719
        %v1989 = vunpack.c.h.b16 %v1719
        %v1990 = vunpack.c.l.b16 %v1720
        %v1991 = vunpack.c.h.b16 %v1720
        %v1992 = vunpack.c.l.b16 %v1721
        %v1993 = vunpack.c.l.b16 %v1722
        %v1994 = vunpack.c.h.b16 %v1722
        %v1995 = vunpack.c.l.b16 %v1723
        %v1996 = vunpack.c.h.b16 %v1723
        %v1997 = vunpack.c.l.b16 %v1724
        %v1998 = vunpack.c.h.b16 %v1724
        %v1999 = vunpack.c.l.b16 %v1725
        %v2000 = vunpack.c.l.b16 %v1726
        %v2001 = vunpack.c.h.b16 %v1726
        %v2002 = vunpack.c.l.b16 %v1727
        %v2003 = vunpack.c.h.b16 %v1727
        %v2004 = vunpack.c.l.b16 %v1728
        %v2005 = vunpack.c.h.b16 %v1728
        %v2006 = vunpack.c.l.b16 %v1729
        %v2007 = vunpack.c.l.b16 %v1730
        %v2008 = vunpack.c.h.b16 %v1730
        %v2009 = vunpack.c.l.b16 %v1731
        %v2010 = vunpack.c.h.b16 %v1731
        %v2011 = vunpack.c.l.b16 %v1732
        %v2012 = vunpack.c.h.b16 %v1732
        %v2013 = vunpack.c.l.b16 %v1733
        %v2014 = vunpack.c.l.b16 %v1734
        %v2015 = vunpack.c.h.b16 %v1734
        %v2016 = vunpack.c.l.b16 %v1735
        %v2017 = vunpack.c.h.b16 %v1735
        %v2018 = vunpack.c.l.b16 %v1736
        %v2019 = vunpack.c.h.b16 %v1736
        %v2020 = vunpack.c.l.b16 %v1737
        %v2021 = vunpack.c.l.b16 %v1738
        %v2022 = vunpack.c.h.b16 %v1738
        %v2023 = vunpack.c.l.b16 %v1739
        %v2024 = vunpack.c.h.b16 %v1739
        %v2025 = vunpack.c.l.b16 %v1740
        %v2026 = vunpack.c.h.b16 %v1740
        %v2027 = vunpack.c.l.b16 %v1741
        %v2028 = vunpack.c.l.b16 %v1742
        %v2029 = vunpack.c.h.b16 %v1742
        %v2030 = vunpack.c.l.b16 %v1743
        %v2031 = vunpack.c.h.b16 %v1743
        %v2032 = vunpack.c.l.b16 %v1744
        %v2033 = vunpack.c.h.b16 %v1744
        %v2034 = vunpack.c.l.b16 %v1745
        %v2035 = vunpack.c.l.b16 %v1746
        %v2036 = vunpack.c.h.b16 %v1746
        %v2037 = vunpack.c.l.b16 %v1747
        %v2038 = vunpack.c.h.b16 %v1747
        %v2039 = vunpack.c.l.b16 %v1748
        %v2040 = vunpack.c.h.b16 %v1748
        %v2041 = vunpack.c.l.b16 %v1749
        %v2042 = vunpack.c.l.b16 %v1750
        %v2043 = vunpack.c.h.b16 %v1750
        %v2044 = vunpack.c.l.b16 %v1751
        %v2045 = vunpack.c.h.b16 %v1751
        %v2046 = vunpack.c.l.b16 %v1752
        %v2047 = vunpack.c.h.b16 %v1752
        %v2048 = vunpack.c.l.b16 %v1753
        %v2049 = vunpack.c.l.b16 %v1754
        %v2050 = vunpack.c.h.b16 %v1754
        %v2051 = vunpack.c.l.b16 %v1755
        %v2052 = vunpack.c.h.b16 %v1755
        %v2053 = vunpack.c.l.b16 %v1756
        %v2054 = vunpack.c.h.b16 %v1756
        %v2055 = vunpack.c.l.b16 %v1757
        %v2056 = vunpack.c.l.b16 %v1758
        %v2057 = vunpack.c.h.b16 %v1758
        %v2058 = vunpack.c.l.b16 %v1759
        %v2059 = vunpack.c.h.b16 %v1759
        %v2060 = vunpack.c.l.b16 %v1760
        %v2061 = vunpack.c.h.b16 %v1760
        %v2062 = vunpack.c.l.b16 %v1761
        %v2063 = vunpack.c.l.b16 %v1762
        %v2064 = vunpack.c.h.b16 %v1762
        %v2065 = vunpack.c.l.b16 %v1763
        %v2066 = vunpack.c.h.b16 %v1763
        %v2067 = vunpack.c.l.b16 %v1764
        %v2068 = vunpack.c.h.b16 %v1764
        %v2069 = vunpack.c.l.b16 %v1765
        %v2070 = vunpack.c.l.b16 %v1766
        %v2071 = vunpack.c.h.b16 %v1766
        %v2072 = vunpack.c.l.b16 %v1767
        %v2073 = vunpack.c.h.b16 %v1767
        %v2074 = vunpack.c.l.b16 %v1768
        %v2075 = vunpack.c.h.b16 %v1768
        %v2076 = vunpack.c.l.b16 %v1769
        %v2077 = vunpack.c.l.b16 %v1770
        %v2078 = vunpack.c.h.b16 %v1770
        %v2079 = vunpack.c.l.b16 %v1771
        %v2080 = vunpack.c.h.b16 %v1771
        %v2081 = vunpack.c.l.b16 %v1772
        %v2082 = vunpack.c.h.b16 %v1772
        %v2083 = vunpack.c.l.b16 %v1773
        %v2084 = vunpack.c.l.b16 %v1774
        %v2085 = vunpack.c.h.b16 %v1774
        %v2086 = vunpack.c.l.b16 %v1775
        %v2087 = vunpack.c.h.b16 %v1775
        %v2088 = vunpack.c.l.b16 %v1776
        %v2089 = vunpack.c.h.b16 %v1776
        %v2090 = vunpack.c.l.b16 %v1777
        %v2091 = vunpack.c.l.b16 %v1778
        %v2092 = vunpack.c.h.b16 %v1778
        %v2093 = vunpack.c.l.b16 %v1779
        %v2094 = vunpack.c.h.b16 %v1779
        %v2095 = vunpack.c.l.b16 %v1780
        %v2096 = vunpack.c.h.b16 %v1780
        %v2097 = vunpack.c.l.b16 %v1781
        %v2098 = vunpack.c.l.b16 %v1782
        %v2099 = vunpack.c.h.b16 %v1782
        %v2100 = vunpack.c.l.b16 %v1783
        %v2101 = vunpack.c.h.b16 %v1783
        %v2102 = vunpack.c.l.b16 %v1784
        %v2103 = vunpack.c.h.b16 %v1784
        %v2104 = vunpack.c.l.b16 %v1785
        %v2105 = vunpack.c.l.b16 %v1786
        %v2106 = vunpack.c.h.b16 %v1786
        %v2107 = vunpack.c.l.b16 %v1787
        %v2108 = vunpack.c.h.b16 %v1787
        %v2109 = vunpack.c.l.b16 %v1788
        %v2110 = vunpack.c.h.b16 %v1788
        %v2111 = vunpack.c.l.b16 %v1789
        %v2112 = vunpack.c.l.b16 %v1790
        %v2113 = vunpack.c.h.b16 %v1790
        %v2114 = vunpack.c.l.b16 %v1791
        %v2115 = vunpack.c.h.b16 %v1791
        %v2116 = vunpack.c.l.b16 %v1792
        %v2117 = vunpack.c.h.b16 %v1792
        %v2118 = vunpack.c.l.b16 %v1793
        %v2119 = vunpack.c.l.b16 %v1794
        %v2120 = vunpack.c.h.b16 %v1794
        %v2121 = vunpack.c.l.b16 %v1795
        %v2122 = vunpack.c.h.b16 %v1795
        %v2123 = vunpack.c.l.b16 %v1796
        %v2124 = vunpack.c.h.b16 %v1796
        %v2125 = vunpack.c.l.b16 %v1797
        %v2126 = vunpack.c.l.b16 %v1798
        %v2127 = vunpack.c.h.b16 %v1798
        %v2128 = vunpack.c.l.b16 %v1799
        %v2129 = vunpack.c.h.b16 %v1799
        %v2130 = vunpack.c.l.b16 %v1800
        %v2131 = vunpack.c.h.b16 %v1800
        %v2132 = vunpack.c.l.b16 %v1801
        %v2133 = vunpack.c.l.b16 %v1802
        %v2134 = vunpack.c.h.b16 %v1802
        %v2135 = vunpack.c.l.b16 %v1803
        %v2136 = vunpack.c.h.b16 %v1803
        %v2137 = vunpack.c.l.b16 %v1804
        %v2138 = vunpack.c.h.b16 %v1804
        %v2139 = vunpack.c.l.b16 %v1805
        %v2140 = vunpack.c.l.b16 %v1806
        %v2141 = vunpack.c.h.b16 %v1806
        %v2142 = vunpack.c.l.b16 %v1807
        %v2143 = vunpack.c.h.b16 %v1807
        %v2144 = vunpack.c.l.b16 %v1808
        %v2145 = vunpack.c.h.b16 %v1808
        %v2146 = vunpack.c.l.b16 %v1809
        %v2147 = vunpack.c.l.b16 %v1810
        %v2148 = vunpack.c.h.b16 %v1810
        %v2149 = vunpack.c.l.b16 %v1811
        %v2150 = vunpack.c.h.b16 %v1811
        %v2151 = vunpack.c.l.b16 %v1812
        %v2152 = vunpack.c.h.b16 %v1812
        %v2153 = vunpack.c.l.b16 %v1813
        %v2154 = vunpack.c.l.b16 %v1814
        %v2155 = vunpack.c.h.b16 %v1814
        %v2156 = vunpack.c.l.b16 %v1815
        %v2157 = vunpack.c.h.b16 %v1815
        %v2158 = vunpack.c.l.b16 %v1816
        %v2159 = vunpack.c.h.b16 %v1816
        %v2160 = vunpack.c.l.b16 %v1817
        %v2161 = vunpack.c.l.b16 %v1818
        %v2162 = vunpack.c.h.b16 %v1818
        %v2163 = vunpack.c.l.b16 %v1819
        %v2164 = vunpack.c.h.b16 %v1819
        %v2165 = vunpack.c.l.b16 %v1820
        %v2166 = vunpack.c.h.b16 %v1820
        %v2167 = vunpack.c.l.b16 %v1821
        %v2168 = vunpack.c.l.b16 %v1822
        %v2169 = vunpack.c.h.b16 %v1822
        %v2170 = vunpack.c.l.b16 %v1823
        %v2171 = vunpack.c.h.b16 %v1823
        %v2172 = vunpack.c.l.b16 %v1824
        %v2173 = vunpack.c.h.b16 %v1824
        %v2174 = vunpack.c.l.b16 %v1825
        %v2175 = vunpack.c.l.b16 %v1826
        %v2176 = vunpack.c.h.b16 %v1826
        %v2177 = vunpack.c.l.b16 %v1827
        %v2178 = vunpack.c.h.b16 %v1827
        %v2179 = vunpack.c.l.b16 %v1828
        %v2180 = vunpack.c.h.b16 %v1828
        %v2181 = vunpack.c.l.b16 %v1829
        %v2182 = vpack.c.b16 %v1965, %v1958
        %v2183 = vpack.c.b16 %v1966, %v1959
        %v2184 = vpack.c.b16 %v1967, %v1960
        %v2185 = vpack.c.b16 %v1968, %v1961
        %v2186 = vpack.c.b16 %v1969, %v1962
        %v2187 = vpack.c.b16 %v1970, %v1963
        %v2188 = vpack.c.b16 %v1971, %v1964
        %v2189 = vpack.c.b16 %v1979, %v1972
        %v2190 = vpack.c.b16 %v1980, %v1973
        %v2191 = vpack.c.b16 %v1981, %v1974
        %v2192 = vpack.c.b16 %v1982, %v1975
        %v2193 = vpack.c.b16 %v1983, %v1976
        %v2194 = vpack.c.b16 %v1984, %v1977
        %v2195 = vpack.c.b16 %v1985, %v1978
        %v2196 = vpack.c.b16 %v1993, %v1986
        %v2197 = vpack.c.b16 %v1994, %v1987
        %v2198 = vpack.c.b16 %v1995, %v1988
        %v2199 = vpack.c.b16 %v1996, %v1989
        %v2200 = vpack.c.b16 %v1997, %v1990
        %v2201 = vpack.c.b16 %v1998, %v1991
        %v2202 = vpack.c.b16 %v1999, %v1992
        %v2203 = vpack.c.b16 %v2007, %v2000
        %v2204 = vpack.c.b16 %v2008, %v2001
        %v2205 = vpack.c.b16 %v2009, %v2002
        %v2206 = vpack.c.b16 %v2010, %v2003
        %v2207 = vpack.c.b16 %v2011, %v2004
        %v2208 = vpack.c.b16 %v2012, %v2005
        %v2209 = vpack.c.b16 %v2013, %v2006
        %v2210 = vpack.c.b16 %v2021, %v2014
        %v2211 = vpack.c.b16 %v2022, %v2015
        %v2212 = vpack.c.b16 %v2023, %v2016
        %v2213 = vpack.c.b16 %v2024, %v2017
        %v2214 = vpack.c.b16 %v2025, %v2018
        %v2215 = vpack.c.b16 %v2026, %v2019
        %v2216 = vpack.c.b16 %v2027, %v2020
        %v2217 = vpack.c.b16 %v2035, %v2028
        %v2218 = vpack.c.b16 %v2036, %v2029
        %v2219 = vpack.c.b16 %v2037, %v2030
        %v2220 = vpack.c.b16 %v2038, %v2031
        %v2221 = vpack.c.b16 %v2039, %v2032
        %v2222 = vpack.c.b16 %v2040, %v2033
        %v2223 = vpack.c.b16 %v2041, %v2034
        %v2224 = vpack.c.b16 %v2049, %v2042
        %v2225 = vpack.c.b16 %v2050, %v2043
        %v2226 = vpack.c.b16 %v2051, %v2044
        %v2227 = vpack.c.b16 %v2052, %v2045
        %v2228 = vpack.c.b16 %v2053, %v2046
        %v2229 = vpack.c.b16 %v2054, %v2047
        %v2230 = vpack.c.b16 %v2055, %v2048
        %v2231 = vpack.c.b16 %v2063, %v2056
        %v2232 = vpack.c.b16 %v2064, %v2057
        %v2233 = vpack.c.b16 %v2065, %v2058
        %v2234 = vpack.c.b16 %v2066, %v2059
        %v2235 = vpack.c.b16 %v2067, %v2060
        %v2236 = vpack.c.b16 %v2068, %v2061
        %v2237 = vpack.c.b16 %v2069, %v2062
        %v2238 = vpack.c.b16 %v2077, %v2070
        %v2239 = vpack.c.b16 %v2078, %v2071
        %v2240 = vpack.c.b16 %v2079, %v2072
        %v2241 = vpack.c.b16 %v2080, %v2073
        %v2242 = vpack.c.b16 %v2081, %v2074
        %v2243 = vpack.c.b16 %v2082, %v2075
        %v2244 = vpack.c.b16 %v2083, %v2076
        %v2245 = vpack.c.b16 %v2091, %v2084
        %v2246 = vpack.c.b16 %v2092, %v2085
        %v2247 = vpack.c.b16 %v2093, %v2086
        %v2248 = vpack.c.b16 %v2094, %v2087
        %v2249 = vpack.c.b16 %v2095, %v2088
        %v2250 = vpack.c.b16 %v2096, %v2089
        %v2251 = vpack.c.b16 %v2097, %v2090
        %v2252 = vpack.c.b16 %v2105, %v2098
        %v2253 = vpack.c.b16 %v2106, %v2099
        %v2254 = vpack.c.b16 %v2107, %v2100
        %v2255 = vpack.c.b16 %v2108, %v2101
        %v2256 = vpack.c.b16 %v2109, %v2102
        %v2257 = vpack.c.b16 %v2110, %v2103
        %v2258 = vpack.c.b16 %v2111, %v2104
        %v2259 = vpack.c.b16 %v2119, %v2112
        %v2260 = vpack.c.b16 %v2120, %v2113
        %v2261 = vpack.c.b16 %v2121, %v2114
        %v2262 = vpack.c.b16 %v2122, %v2115
        %v2263 = vpack.c.b16 %v2123, %v2116
        %v2264 = vpack.c.b16 %v2124, %v2117
        %v2265 = vpack.c.b16 %v2125, %v2118
        %v2266 = vpack.c.b16 %v2133, %v2126
        %v2267 = vpack.c.b16 %v2134, %v2127
        %v2268 = vpack.c.b16 %v2135, %v2128
        %v2269 = vpack.c.b16 %v2136, %v2129
        %v2270 = vpack.c.b16 %v2137, %v2130
        %v2271 = vpack.c.b16 %v2138, %v2131
        %v2272 = vpack.c.b16 %v2139, %v2132
        %v2273 = vpack.c.b16 %v2147, %v2140
        %v2274 = vpack.c.b16 %v2148, %v2141
        %v2275 = vpack.c.b16 %v2149, %v2142
        %v2276 = vpack.c.b16 %v2150, %v2143
        %v2277 = vpack.c.b16 %v2151, %v2144
        %v2278 = vpack.c.b16 %v2152, %v2145
        %v2279 = vpack.c.b16 %v2153, %v2146
        %v2280 = vpack.c.b16 %v2161, %v2154
        %v2281 = vpack.c.b16 %v2162, %v2155
        %v2282 = vpack.c.b16 %v2163, %v2156
        %v2283 = vpack.c.b16 %v2164, %v2157
        %v2284 = vpack.c.b16 %v2165, %v2158
        %v2285 = vpack.c.b16 %v2166, %v2159
        %v2286 = vpack.c.b16 %v2167, %v2160
        %v2287 = vpack.c.b16 %v2175, %v2168
        %v2288 = vpack.c.b16 %v2176, %v2169
        %v2289 = vpack.c.b16 %v2177, %v2170
        %v2290 = vpack.c.b16 %v2178, %v2171
        %v2291 = vpack.c.b16 %v2179, %v2172
        %v2292 = vpack.c.b16 %v2180, %v2173
        %v2293 = vpack.c.b16 %v2181, %v2174
        %2406 = vmatpush.bf16.msra.mxu0 %v2231
        %2407 = vmatpush.bf16.msra.mxu0 %v2224
        %2408 = vmatpush.bf16.msra.mxu0 %v2217
        %2409 = vmatpush.bf16.msra.mxu0 %v2210
        %2410 = vmatpush.bf16.msra.mxu0 %v2203
        %2411 = vmatpush.bf16.msra.mxu0 %v2196
        %2412 = vmatpush.bf16.msra.mxu0 %v2189
        %2413 = vmatpush.bf16.msra.mxu0 %v2182
        %2414 = vmatmul.bf16.gmra.mxu0 %v1700
        %v2415 = vpop.f32.mrf.mxu0
        %v2416 = vadd.f32 0.0, %v2415
        %v2417 = vpop.f32.mrf.mxu0
        %2418 = vdwg.mxu0
        %2419 = vmatpush.bf16.msra.mxu0 %v2287
        %2420 = vmatpush.bf16.msra.mxu0 %v2280
        %2421 = vmatpush.bf16.msra.mxu0 %v2273
        %2422 = vmatpush.bf16.msra.mxu0 %v2266
        %2423 = vmatpush.bf16.msra.mxu0 %v2259
        %2424 = vmatpush.bf16.msra.mxu0 %v2252
        %2425 = vmatpush.bf16.msra.mxu0 %v2245
        %2426 = vmatpush.bf16.msra.mxu0 %v2238
        %2427 = vmatmul.bf16.gmra.mxu0 %v1701
        %v2428 = vpop.f32.mrf.mxu0
        %v2429 = vadd.f32 %v2416, %v2428
        %v2430 = vpop.f32.mrf.mxu0
        %2431 = vdwg.mxu0
        %2432 = vmatpush.bf16.msra.mxu0 %v2232
        %2433 = vmatpush.bf16.msra.mxu0 %v2225
        %2434 = vmatpush.bf16.msra.mxu0 %v2218
        %2435 = vmatpush.bf16.msra.mxu0 %v2211
        %2436 = vmatpush.bf16.msra.mxu0 %v2204
        %2437 = vmatpush.bf16.msra.mxu0 %v2197
        %2438 = vmatpush.bf16.msra.mxu0 %v2190
        %2439 = vmatpush.bf16.msra.mxu0 %v2183
        %2440 = vmatmul.bf16.gmra.mxu0 %v1700
        %v2441 = vpop.f32.mrf.mxu0
        %v2442 = vadd.f32 0.0, %v2441
        %v2443 = vpop.f32.mrf.mxu0
        %2444 = vdwg.mxu0
        %2445 = vmatpush.bf16.msra.mxu0 %v2288
        %2446 = vmatpush.bf16.msra.mxu0 %v2281
        %2447 = vmatpush.bf16.msra.mxu0 %v2274
        %2448 = vmatpush.bf16.msra.mxu0 %v2267
        %2449 = vmatpush.bf16.msra.mxu0 %v2260
        %2450 = vmatpush.bf16.msra.mxu0 %v2253
        %2451 = vmatpush.bf16.msra.mxu0 %v2246
        %2452 = vmatpush.bf16.msra.mxu0 %v2239
        %2453 = vmatmul.bf16.gmra.mxu0 %v1701
        %v2454 = vpop.f32.mrf.mxu0
        %v2455 = vadd.f32 %v2442, %v2454
        %v2456 = vpop.f32.mrf.mxu0
        %2457 = vdwg.mxu0
        %2458 = vmatpush.bf16.msra.mxu0 %v2233
        %2459 = vmatpush.bf16.msra.mxu0 %v2226
        %2460 = vmatpush.bf16.msra.mxu0 %v2219
        %2461 = vmatpush.bf16.msra.mxu0 %v2212
        %2462 = vmatpush.bf16.msra.mxu0 %v2205
        %2463 = vmatpush.bf16.msra.mxu0 %v2198
        %2464 = vmatpush.bf16.msra.mxu0 %v2191
        %2465 = vmatpush.bf16.msra.mxu0 %v2184
        %2466 = vmatmul.bf16.gmra.mxu0 %v1700
        %v2467 = vpop.f32.mrf.mxu0
        %v2468 = vadd.f32 0.0, %v2467
        %v2469 = vpop.f32.mrf.mxu0
        %2470 = vdwg.mxu0
        %2471 = vmatpush.bf16.msra.mxu0 %v2289
        %2472 = vmatpush.bf16.msra.mxu0 %v2282
        %2473 = vmatpush.bf16.msra.mxu0 %v2275
        %2474 = vmatpush.bf16.msra.mxu0 %v2268
        %2475 = vmatpush.bf16.msra.mxu0 %v2261
        %2476 = vmatpush.bf16.msra.mxu0 %v2254
        %2477 = vmatpush.bf16.msra.mxu0 %v2247
        %2478 = vmatpush.bf16.msra.mxu0 %v2240
        %2479 = vmatmul.bf16.gmra.mxu0 %v1701
        %v2480 = vpop.f32.mrf.mxu0
        %v2481 = vadd.f32 %v2468, %v2480
        %v2482 = vpop.f32.mrf.mxu0
        %2483 = vdwg.mxu0
        %2484 = vmatpush.bf16.msra.mxu0 %v2234
        %2485 = vmatpush.bf16.msra.mxu0 %v2227
        %2486 = vmatpush.bf16.msra.mxu0 %v2220
        %2487 = vmatpush.bf16.msra.mxu0 %v2213
        %2488 = vmatpush.bf16.msra.mxu0 %v2206
        %2489 = vmatpush.bf16.msra.mxu0 %v2199
        %2490 = vmatpush.bf16.msra.mxu0 %v2192
        %2491 = vmatpush.bf16.msra.mxu0 %v2185
        %2492 = vmatmul.bf16.gmra.mxu0 %v1700
        %v2493 = vpop.f32.mrf.mxu0
        %v2494 = vadd.f32 0.0, %v2493
        %v2495 = vpop.f32.mrf.mxu0
        %2496 = vdwg.mxu0
        %2497 = vmatpush.bf16.msra.mxu0 %v2290
        %2498 = vmatpush.bf16.msra.mxu0 %v2283
        %2499 = vmatpush.bf16.msra.mxu0 %v2276
        %2500 = vmatpush.bf16.msra.mxu0 %v2269
        %2501 = vmatpush.bf16.msra.mxu0 %v2262
        %2502 = vmatpush.bf16.msra.mxu0 %v2255
        %2503 = vmatpush.bf16.msra.mxu0 %v2248
        %2504 = vmatpush.bf16.msra.mxu0 %v2241
        %2505 = vmatmul.bf16.gmra.mxu0 %v1701
        %v2506 = vpop.f32.mrf.mxu0
        %v2507 = vadd.f32 %v2494, %v2506
        %v2508 = vpop.f32.mrf.mxu0
        %2509 = vdwg.mxu0
        %2510 = vmatpush.bf16.msra.mxu0 %v2235
        %2511 = vmatpush.bf16.msra.mxu0 %v2228
        %2512 = vmatpush.bf16.msra.mxu0 %v2221
        %2513 = vmatpush.bf16.msra.mxu0 %v2214
        %2514 = vmatpush.bf16.msra.mxu0 %v2207
        %2515 = vmatpush.bf16.msra.mxu0 %v2200
        %2516 = vmatpush.bf16.msra.mxu0 %v2193
        %2517 = vmatpush.bf16.msra.mxu0 %v2186
        %2518 = vmatmul.bf16.gmra.mxu0 %v1700
        %v2519 = vpop.f32.mrf.mxu0
        %v2520 = vadd.f32 0.0, %v2519
        %v2521 = vpop.f32.mrf.mxu0
        %2522 = vdwg.mxu0
        %2523 = vmatpush.bf16.msra.mxu0 %v2291
        %2524 = vmatpush.bf16.msra.mxu0 %v2284
        %2525 = vmatpush.bf16.msra.mxu0 %v2277
        %2526 = vmatpush.bf16.msra.mxu0 %v2270
        %2527 = vmatpush.bf16.msra.mxu0 %v2263
        %2528 = vmatpush.bf16.msra.mxu0 %v2256
        %2529 = vmatpush.bf16.msra.mxu0 %v2249
        %2530 = vmatpush.bf16.msra.mxu0 %v2242
        %2531 = vmatmul.bf16.gmra.mxu0 %v1701
        %v2532 = vpop.f32.mrf.mxu0
        %v2533 = vadd.f32 %v2520, %v2532
        %v2534 = vpop.f32.mrf.mxu0
        %2535 = vdwg.mxu0
        %2536 = vmatpush.bf16.msra.mxu0 %v2236
        %2537 = vmatpush.bf16.msra.mxu0 %v2229
        %2538 = vmatpush.bf16.msra.mxu0 %v2222
        %2539 = vmatpush.bf16.msra.mxu0 %v2215
        %2540 = vmatpush.bf16.msra.mxu0 %v2208
        %2541 = vmatpush.bf16.msra.mxu0 %v2201
        %2542 = vmatpush.bf16.msra.mxu0 %v2194
        %2543 = vmatpush.bf16.msra.mxu0 %v2187
        %2544 = vmatmul.bf16.gmra.mxu0 %v1700
        %v2545 = vpop.f32.mrf.mxu0
        %v2546 = vadd.f32 0.0, %v2545
        %v2547 = vpop.f32.mrf.mxu0
        %2548 = vdwg.mxu0
        %2549 = vmatpush.bf16.msra.mxu0 %v2292
        %2550 = vmatpush.bf16.msra.mxu0 %v2285
        %2551 = vmatpush.bf16.msra.mxu0 %v2278
        %2552 = vmatpush.bf16.msra.mxu0 %v2271
        %2553 = vmatpush.bf16.msra.mxu0 %v2264
        %2554 = vmatpush.bf16.msra.mxu0 %v2257
        %2555 = vmatpush.bf16.msra.mxu0 %v2250
        %2556 = vmatpush.bf16.msra.mxu0 %v2243
        %2557 = vmatmul.bf16.gmra.mxu0 %v1701
        %v2558 = vpop.f32.mrf.mxu0
        %v2559 = vadd.f32 %v2546, %v2558
        %v2560 = vpop.f32.mrf.mxu0
        %2561 = vdwg.mxu0
        %2562 = vmatpush.bf16.msra.mxu0 %v2237
        %2563 = vmatpush.bf16.msra.mxu0 %v2230
        %2564 = vmatpush.bf16.msra.mxu0 %v2223
        %2565 = vmatpush.bf16.msra.mxu0 %v2216
        %2566 = vmatpush.bf16.msra.mxu0 %v2209
        %2567 = vmatpush.bf16.msra.mxu0 %v2202
        %2568 = vmatpush.bf16.msra.mxu0 %v2195
        %2569 = vmatpush.bf16.msra.mxu0 %v2188
        %2570 = vmatmul.bf16.gmra.mxu0 %v1700
        %v2571 = vpop.f32.mrf.mxu0
        %v2572 = vadd.f32 0.0, %v2571
        %v2573 = vpop.f32.mrf.mxu0
        %2574 = vdwg.mxu0
        %2575 = vmatpush.bf16.msra.mxu0 %v2293
        %2576 = vmatpush.bf16.msra.mxu0 %v2286
        %2577 = vmatpush.bf16.msra.mxu0 %v2279
        %2578 = vmatpush.bf16.msra.mxu0 %v2272
        %2579 = vmatpush.bf16.msra.mxu0 %v2265
        %2580 = vmatpush.bf16.msra.mxu0 %v2258
        %2581 = vmatpush.bf16.msra.mxu0 %v2251
        %2582 = vmatpush.bf16.msra.mxu0 %v2244
        %2583 = vmatmul.bf16.gmra.mxu0 %v1701
        %v2584 = vpop.f32.mrf.mxu0
        %v2585 = vadd.f32 %v2572, %v2584
        %v2586 = vpop.f32.mrf.mxu0
        %2587 = vdwg.mxu0
        %v2588 = vadd.f32 %v1693, %v2429
        %v2589 = vadd.f32 %v1694, %v2455
        %v2590 = vadd.f32 %v1695, %v2481
        %v2591 = vadd.f32 %v1696, %v2507
        %v2592 = vadd.f32 %v1697, %v2533
        %v2593 = vadd.f32 %v1698, %v2559
        %v2594 = vadd.f32 %v1699, %v2585
        %2595 = vst [vmem:[#allocation3] sm:$0xff] %v2588
        %2596 = vst [vmem:[#allocation3 + $0x8] sm:$0xff] %v2589
        %2597 = vst [vmem:[#allocation3 + $0x10] sm:$0xff] %v2590
        %2598 = vst [vmem:[#allocation3 + $0x18] sm:$0xff] %v2591
        %2599 = vst [vmem:[#allocation3 + $0x20] sm:$0xff] %v2592
        %2600 = vst [vmem:[#allocation3 + $0x28] sm:$0xff] %v2593
        %2601 = vst [vmem:[#allocation3 + $0x30] sm:$0xff] %v2594
        %p2602 = scmp.eq.s32.totalorder %s31, 3
        // Predicated region
        $region101: #{tpu_custom_call.1} parent=59 // pred_check
          %p2603 = pneg %p2602
        $region102: #{tpu_custom_call.1} parent=59 // pred_check_branch
          %2605 = sbr.rel (%p2603) target = $region104
        $region103: #{tpu_custom_call.1} parent=59 // pred_region
          %v2606 = vld [vmem:[#allocation3] sm:$0xff]
          %v2607 = vld [vmem:[#allocation3 + $0x8] sm:$0xff]
          %v2608 = vld [vmem:[#allocation3 + $0x10] sm:$0xff]
          %v2609 = vld [vmem:[#allocation3 + $0x18] sm:$0xff]
          %v2610 = vld [vmem:[#allocation3 + $0x20] sm:$0xff]
          %v2611 = vld [vmem:[#allocation3 + $0x28] sm:$0xff]
          %v2612 = vld [vmem:[#allocation3 + $0x30] sm:$0xff]
          %v2613 = vtanh.pop %v2606
          %v2614 = vtanh.pop %v2607
          %v2615 = vtanh.pop %v2608
          %v2616 = vtanh.pop %v2609
          %v2617 = vtanh.pop %v2610
          %v2618 = vtanh.pop %v2611
          %v2619 = vtanh.pop %v2612
          %2620 = vst [vmem:[#allocation19] sm:$0xff] %v2613
          %2621 = vst [vmem:[#allocation19 + $0x8] sm:$0xff] %v2614
          %2622 = vst [vmem:[#allocation19 + $0x10] sm:$0xff] %v2615
          %2623 = vst [vmem:[#allocation19 + $0x18] sm:$0xff] %v2616
          %2624 = vst [vmem:[#allocation19 + $0x20] sm:$0xff] %v2617
          %2625 = vst [vmem:[#allocation19 + $0x28] sm:$0xff] %v2618
          %2626 = vst [vmem:[#allocation19 + $0x30] sm:$0xff] %v2619
        $region104: #{tpu_custom_call.1} parent=59 // pred_fallthru
          _
        // Predicated region
        $region105: #{tpu_custom_call.1} parent=59 // pred_check
          %p2627 = pneg %p269
        $region106: #{tpu_custom_call.1} parent=59 // pred_check_branch
          %2629 = sbr.rel (%p2627) target = $region108
        $region107: #{tpu_custom_call.1} parent=59 // pred_region
          %2631 = vsyncadd [#allocation6], 0
          %s2633 = sshll.u32 [#allocation19], 4
          %s2634 = int_to_ptr.vmem [resolvable:$true] %s2633
          %s2635 = sshll.u32 %s10, 4
          %s2636 = int_to_ptr.hbm [resolvable:$true] %s2635
          %2638 = dma.vmem_to_hbm [thread:$0]  %s2634, 896, %s2636, [#allocation6]
        $region108: #{tpu_custom_call.1} parent=59 // pred_fallthru
          _
        // Predicated region
        $region109: #{tpu_custom_call.1} parent=59 // pred_check
          %p2639 = pneg %p269
        $region110: #{tpu_custom_call.1} parent=59 // pred_check_branch
          %2641 = sbr.rel (%p2639) target = $region112
        $region111: #{tpu_custom_call.1} parent=59 // pred_region
          %2643 = dma.done [#allocation6], 896
        $region112: #{tpu_custom_call.1} parent=59 // pred_fallthru
          _
      $region60: #{tpu_custom_call.1} parent=5 // pred_fallthru
        _
      %p2644 = scmp.le.s32.totalorder 2, %s26
      // Predicated region
      $region113: #{tpu_custom_call.1} parent=5 // pred_check
        %p2645 = pneg %p2644
      $region114: #{tpu_custom_call.1} parent=5 // pred_check_branch
        %2647 = sbr.rel (%p2645) target = $region116
      $region115: #{tpu_custom_call.1} parent=5 // pred_region
        %s2648 = ssub.s32 %s26, 2
      $region116: #{tpu_custom_call.1} parent=5 // pred_fallthru
        _
    $region6: #{tpu_custom_call.1} parent=1 // loop_footer
      %s30 = sadd.s32 1, %s26
    $region7: #{tpu_custom_call.1} parent=1 // loop_footer_branch
      %25 = sbr.rel target = $region3
    $region8: #{tpu_custom_call.1} parent=1 // loop_exit
      _
    %2649 = vsyncpa [#allocation5], 1
    %s2650 = scalar_lea.sflag [#allocation5], 1
    %2651 = vsyncpa %s2650, 1
    %2652 = vsyncpa [#allocation8], 1
    %2653 = vsyncpa [#allocation11], 1
    %2654 = vsyncpa [#allocation14], 1
    %s2655 = scalar_lea.sflag [#allocation14], 1
    %2656 = vsyncpa %s2655, 1
    %2657 = vsyncpa [#allocation17], 1
    %s2658 = scalar_lea.sflag [#allocation17], 1
    %2659 = vsyncpa %s2658, 1
    %2660 = vsyncpa [#allocation6], 1
    %s2661 = scalar_lea.sflag [#allocation6], 1
    %2662 = vsyncpa %s2661, 1

</llo_original>
